<compile_context>
chip_gen: v5e
topology: v5e:2x2
jax: 0.10.0
libtpu: 0.0.40
codegen_flags: <defaults>
</compile_context>

<pallas_src>
import jax
import jax.numpy as jnp
from jax import lax
from jax.experimental import pallas as pl
from jax.experimental.pallas import tpu as pltpu


# ----------------------------------------------------------------------------
# Bilinear x2 upsample (align_corners=True) via interpolation matrices
# ----------------------------------------------------------------------------
def _bilinear_matrix(n_in, n_out):
    """(n_out, n_in) matrix for 1-D bilinear resize with align_corners=True."""
    if n_in == 1:
        return jnp.ones((n_out, 1), jnp.float32)
    src = jnp.arange(n_out, dtype=jnp.float32) * (n_in - 1) / (n_out - 1)
    lo = jnp.clip(jnp.floor(src).astype(jnp.int32), 0, n_in - 2)
    frac = src - lo.astype(jnp.float32)
    rows = jnp.arange(n_out)
    m = jnp.zeros((n_out, n_in), jnp.float32)
    m = m.at[rows, lo].add(1.0 - frac)
    m = m.at[rows, lo + 1].add(frac)
    return m


def _upsample2x_bilinear(x_nhwc):
    """nn.Upsample(scale_factor=2, mode='bilinear', align_corners=True), NHWC."""
    _, h, w, _ = x_nhwc.shape
    mh = _bilinear_matrix(h, 2 * h)
    mw = _bilinear_matrix(w, 2 * w)
    return jnp.einsum('ih,jw,nhwc->nijc', mh, mw, x_nhwc)


# ----------------------------------------------------------------------------
# In-kernel helpers
# ----------------------------------------------------------------------------
def _conv3x3_relu(taps, w_mat, bias, h, w):
    """taps: list of (h, w, c_i) arrays in (dy, dx[, source]) order.

    Builds the im2col patch by a single lane-concat and does ONE fat-K MXU
    matmul (rows, K) x (K, Cout) with K = sum(c_i) * 9 taps, then +bias, ReLU.
    """
    patch = jnp.concatenate(taps, axis=-1)                 # (h, w, K)
    k = patch.shape[-1]
    acc = jnp.dot(patch.reshape(h * w, k), w_mat,
                  preferred_element_type=jnp.float32)       # (h*w, Cout)
    y = jnp.maximum(acc + bias, 0.0)
    return y.reshape(h, w, w_mat.shape[1])


def _zero_border(pad_ref):
    """Zero only the 1-pixel border ring of a padded (Hp, Wp, C) scratch."""
    hp, wp, c = pad_ref.shape
    pad_ref[0:1, :, :] = jnp.zeros((1, wp, c), jnp.float32)
    pad_ref[hp - 1:hp, :, :] = jnp.zeros((1, wp, c), jnp.float32)
    pad_ref[:, 0:1, :] = jnp.zeros((hp, 1, c), jnp.float32)
    pad_ref[:, wp - 1:wp, :] = jnp.zeros((hp, 1, c), jnp.float32)


# ----------------------------------------------------------------------------
# Fused UNetUpBlock kernel:
#   conv3x3+ReLU on the (already upsampled) decoder feats,
#   channel-concat with the encoder skip (fused into the im2col),
#   conv3x3+foldedBN+ReLU, conv3x3+foldedBN+ReLU.
# ----------------------------------------------------------------------------
def _up_block_kernel(up_ref, skip_ref, wu_ref, bu_ref, w1_ref, b1_ref,
                     w2_ref, b2_ref, out_ref, ypad_ref, y1pad_ref):
    # up_ref   : (1, H+2, W+2, Cd)  spatially padded upsampled decoder feats
    # skip_ref : (1, H+2, W+2, Ce)  spatially padded encoder skip feats
    # wu_ref   : (9*Cd, C1),        bu_ref: (1, C1)      upconv (no norm)
    # w1_ref   : (9*(Ce+C1), Cout), b1_ref: (1, Cout)    conv1 (BN folded)
    # w2_ref   : (9*Cout, Cout),    b2_ref: (1, Cout)    conv2 (BN folded)
    # out_ref  : (1, H, W, Cout)
    # ypad_ref : VMEM scratch (H+2, W+2, C1)   padded upconv output
    # y1pad_ref: VMEM scratch (H+2, W+2, Cout) padded conv1 output
    h, w = out_ref.shape[1], out_ref.shape[2]

    # ---- upconv: one (h*w, 9*Cd) x (9*Cd, C1) matmul + ReLU ------------------
    taps = [up_ref[0, dy:dy + h, dx:dx + w, :]
            for dy in range(3) for dx in range(3)]
    y_up = _conv3x3_relu(taps, wu_ref[...], bu_ref[...], h, w)

    # stage padded for the next conv (only the border ring is zeroed)
    _zero_border(ypad_ref)
    ypad_ref[1:h + 1, 1:w + 1, :] = y_up

    # ---- conv1 on concat([skip, upconv_out], channel) + folded BN + ReLU -----
    # The channel concat is fused into the im2col lane-concat: per tap the K
    # slice is [skip channels, upconv channels], matching the weight layout.
    taps = []
    for dy in range(3):
        for dx in range(3):
            taps.append(skip_ref[0, dy:dy + h, dx:dx + w, :])
            taps.append(ypad_ref[dy:dy + h, dx:dx + w, :])
    y1 = _conv3x3_relu(taps, w1_ref[...], b1_ref[...], h, w)

    _zero_border(y1pad_ref)
    y1pad_ref[1:h + 1, 1:w + 1, :] = y1

    # ---- conv2 + folded BN + ReLU --------------------------------------------
    taps = [y1pad_ref[dy:dy + h, dx:dx + w, :]
            for dy in range(3) for dx in range(3)]
    y2 = _conv3x3_relu(taps, w2_ref[...], b2_ref[...], h, w)
    out_ref[...] = y2.reshape(1, h, w, y2.shape[-1])


def _up_block(x_nhwc, skip_nhwc, p):
    """One UNetUpBlock (bilinear x2 resize in XLA, everything else fused)."""
    up = _upsample2x_bilinear(x_nhwc)                      # (N, H, W, Cd)
    n, h, w, cd = up.shape
    ce = skip_nhwc.shape[-1]
    c1 = p["wu"].shape[-1]
    cout = p["w2"].shape[-1]

    # spatial pad=1 for the two kernel inputs (in-kernel activations use the
    # border-ring scratch trick instead)
    up_p = jnp.pad(up, ((0, 0), (1, 1), (1, 1), (0, 0)))
    skip_p = jnp.pad(skip_nhwc, ((0, 0), (1, 1), (1, 1), (0, 0)))

    # im2col weight layout: (ky, kx, cin) flattened -> rows of (9*Cin, Cout)
    wu = p["wu"].reshape(9 * cd, c1)
    w1 = p["w1"].reshape(9 * (ce + c1), cout)
    w2 = p["w2"].reshape(9 * cout, cout)

    return pl.pallas_call(
        _up_block_kernel,
        out_shape=jax.ShapeDtypeStruct((n, h, w, cout), jnp.float32),
        grid=(n,),
        in_specs=[
            pl.BlockSpec((1, h + 2, w + 2, cd), lambda i: (i, 0, 0, 0)),
            pl.BlockSpec((1, h + 2, w + 2, ce), lambda i: (i, 0, 0, 0)),
            pl.BlockSpec((9 * cd, c1), lambda i: (0, 0)),
            pl.BlockSpec((1, c1), lambda i: (0, 0)),
            pl.BlockSpec((9 * (ce + c1), cout), lambda i: (0, 0)),
            pl.BlockSpec((1, cout), lambda i: (0, 0)),
            pl.BlockSpec((9 * cout, cout), lambda i: (0, 0)),
            pl.BlockSpec((1, cout), lambda i: (0, 0)),
        ],
        out_specs=pl.BlockSpec((1, h, w, cout), lambda i: (i, 0, 0, 0)),
        scratch_shapes=[
            pltpu.VMEM((h + 2, w + 2, c1), jnp.float32),    # padded upconv out
            pltpu.VMEM((h + 2, w + 2, cout), jnp.float32),  # padded conv1 out
        ],
        compiler_params=pltpu.CompilerParams(
            dimension_semantics=("parallel",),
            vmem_limit_bytes=32 * 1024 * 1024),
    )(up_p, skip_p, wu, p["bu"], w1, p["b1"], w2, p["b2"])


# ----------------------------------------------------------------------------
# Final kernel: 1x1 conv to RGB + mask blend (row-tiled, pointwise)
#   out = mask * to_rgb(feat) + (1 - mask) * input_image
# ----------------------------------------------------------------------------
def _rgb_blend_kernel(f_ref, img_ref, m_ref, w_ref, b_ref, out_ref):
    th, w, cf = f_ref.shape[1], f_ref.shape[2], f_ref.shape[3]
    rgb = jnp.dot(f_ref[0].reshape(th * w, cf), w_ref[...],
                  preferred_element_type=jnp.float32) + b_ref[...]
    rgb = rgb.reshape(th, w, 3)
    m = m_ref[0]                                            # (th, w, 1)
    out_ref[...] = (m * rgb + (1.0 - m) * img_ref[0]).reshape(1, th, w, 3)


def _to_rgb_blend(feat, image, mask, w_rgb, b_rgb, row_tile=8):
    n, h, w, cf = feat.shape
    th = row_tile if h % row_tile == 0 else h
    return pl.pallas_call(
        _rgb_blend_kernel,
        out_shape=jax.ShapeDtypeStruct((n, h, w, 3), jnp.float32),
        grid=(n, h // th),
        in_specs=[
            pl.BlockSpec((1, th, w, cf), lambda i, j: (i, j, 0, 0)),
            pl.BlockSpec((1, th, w, 3), lambda i, j: (i, j, 0, 0)),
            pl.BlockSpec((1, th, w, 1), lambda i, j: (i, j, 0, 0)),
            pl.BlockSpec((cf, 3), lambda i, j: (0, 0)),
            pl.BlockSpec((1, 3), lambda i, j: (0, 0)),
        ],
        out_specs=pl.BlockSpec((1, th, w, 3), lambda i, j: (i, j, 0, 0)),
        compiler_params=pltpu.CompilerParams(
            dimension_semantics=("parallel", "parallel"),
            vmem_limit_bytes=32 * 1024 * 1024),
    )(feat, image, mask, w_rgb, b_rgb)


# ----------------------------------------------------------------------------
# Full decoder forward (NCHW in / NCHW out, like the PyTorch module)
# ----------------------------------------------------------------------------
def unet_decoder_forward(encoder_outputs, input_image, mask, params):
    """UNetDecoder.forward (attention_layer=None, image_fusion=False).

    encoder_outputs: list of NCHW arrays, [0] is the deepest (lowest res).
    input_image: (N, 3, H, W); mask: (N, 1, H, W).  Returns (N, 3, H, W).
    """
    # NCHW -> NHWC exactly once; the whole decoder runs in NHWC internally.
    feats = [jnp.transpose(e, (0, 2, 3, 1)) for e in encoder_outputs]
    img = jnp.transpose(input_image, (0, 2, 3, 1))
    msk = jnp.transpose(mask, (0, 2, 3, 1))

    out = feats[0]
    for p, skip in zip(params["up_blocks"], feats[1:]):
        out = _up_block(out, skip, p)

    res = _to_rgb_blend(out, img, msk, params["w_rgb"], params["b_rgb"])
    return jnp.transpose(res, (0, 3, 1, 2))


# ----------------------------------------------------------------------------
# Deterministic parameters (Conv + eval-mode BatchNorm folded), no key reuse
# ----------------------------------------------------------------------------
def init_params(key, encoder_blocks_channels, depth, eps=1e-5):
    chans = list(encoder_blocks_channels)
    in_ch = chans.pop()                       # deepest encoder channels
    keys = iter(jax.random.split(key, 4 * depth + 4))

    def conv_hwio(k, cin, cout):
        kw, kb = jax.random.split(k)
        w = 0.1 * jax.random.normal(kw, (3, 3, cin, cout), jnp.float32)
        b = 0.1 * jax.random.normal(kb, (cout,), jnp.float32)
        return w, b

    def conv_bn_hwio(k, cin, cout):
        kc, kg, kbe, km, kv = jax.random.split(k, 5)
        w, b = conv_hwio(kc, cin, cout)
        gamma = 1.0 + 0.1 * jax.random.normal(kg, (cout,), jnp.float32)
        beta = 0.1 * jax.random.normal(kbe, (cout,), jnp.float32)
        mean = 0.1 * jax.random.normal(km, (cout,), jnp.float32)
        var = 1.0 + 0.1 * jax.random.uniform(kv, (cout,), jnp.float32)
        s = gamma * lax.rsqrt(var + eps)
        return w * s, (b - mean) * s + beta   # BN folded into weight / bias

    blocks = []
    out_ch = in_ch
    for _ in range(depth - 1):
        out_ch = chans.pop() if chans else in_ch // 2
        enc_ch = out_ch                       # skip channels == out_channels
        wu, bu = conv_hwio(next(keys), in_ch, out_ch)          # upconv, no BN
        w1, b1 = conv_bn_hwio(next(keys), enc_ch + out_ch, out_ch)
        w2, b2 = conv_bn_hwio(next(keys), out_ch, out_ch)
        blocks.append(dict(wu=wu, bu=bu.reshape(1, -1),
                           w1=w1, b1=b1.reshape(1, -1),
                           w2=w2, b2=b2.reshape(1, -1)))
        in_ch = out_ch

    kw, kb = jax.random.split(next(keys))
    w_rgb = 0.1 * jax.random.normal(kw, (out_ch, 3), jnp.float32)
    b_rgb = 0.1 * jax.random.normal(kb, (3,), jnp.float32).reshape(1, 3)
    return {"up_blocks": blocks, "w_rgb": w_rgb, "b_rgb": b_rgb}


# ----------------------------------------------------------------------------
# Pure-JAX reference (same folded parameters)
# ----------------------------------------------------------------------------
def reference(encoder_outputs, input_image, mask, params):
    dn = ("NHWC", "HWIO", "NHWC")
    feats = [jnp.transpose(e, (0, 2, 3, 1)) for e in encoder_outputs]
    img = jnp.transpose(input_image, (0, 2, 3, 1))
    msk = jnp.transpose(mask, (0, 2, 3, 1))

    def conv3x3(x, w, b):
        return lax.conv_general_dilated(x, w, (1, 1), "SAME",
                                        dimension_numbers=dn) + b

    out = feats[0]
    for p, skip in zip(params["up_blocks"], feats[1:]):
        up = _upsample2x_bilinear(out)
        y = jnp.maximum(conv3x3(up, p["wu"], p["bu"]), 0.0)
        y = jnp.concatenate([skip, y], axis=-1)
        y = jnp.maximum(conv3x3(y, p["w1"], p["b1"]), 0.0)
        out = jnp.maximum(conv3x3(y, p["w2"], p["b2"]), 0.0)

    rgb = jnp.einsum('nhwc,cd->nhwd', out, params["w_rgb"]) + params["b_rgb"]
    res = msk * rgb + (1.0 - msk) * img
    return jnp.transpose(res, (0, 3, 1, 2))


if __name__ == "__main__":
    key = jax.random.PRNGKey(0)
    k_enc, k_img, k_msk, k_par = jax.random.split(key, 4)

    N, H, W = 2, 16, 16
    depth = 3
    enc_channels = [8, 16, 32]                 # shallow -> deep

    ks = jax.random.split(k_enc, 3)
    encoder_outputs = [                        # [0] = deepest, NCHW like PyTorch
        jax.random.normal(ks[0], (N, 32, H // 4, W // 4), jnp.float32),
        jax.random.normal(ks[1], (N, 16, H // 2, W // 2), jnp.float32),
        jax.random.normal(ks[2], (N, 8, H, W), jnp.float32),
    ]
    input_image = jax.random.normal(k_img, (N, 3, H, W), jnp.float32)
    mask = jax.random.uniform(k_msk, (N, 1, H, W), jnp.float32)

    params = init_params(k_par, enc_channels, depth)

    out = unet_decoder_forward(encoder_outputs, input_image, mask, params)
    out = jax.block_until_ready(out)

    ref = reference(encoder_outputs, input_image, mask, params)
    assert out.shape == (N, 3, H, W), out.shape
    max_err = float(jnp.max(jnp.abs(out - ref)))
    assert jnp.allclose(out, ref, atol=2e-3, rtol=2e-3), max_err
    print("KERNEL_OK")
</pallas_src>

<mosaic_0001>
module attributes {stable_mosaic.version = 11 : i64} {
  func.func @_up_block_kernel(%arg0: i32, %arg1: memref<1x10x10x32xf32, #tpu.memory_space<vmem>>, %arg2: memref<1x10x10x16xf32, #tpu.memory_space<vmem>>, %arg3: memref<288x16xf32, #tpu.memory_space<vmem>>, %arg4: memref<1x16xf32, #tpu.memory_space<vmem>>, %arg5: memref<288x16xf32, #tpu.memory_space<vmem>>, %arg6: memref<1x16xf32, #tpu.memory_space<vmem>>, %arg7: memref<144x16xf32, #tpu.memory_space<vmem>>, %arg8: memref<1x16xf32, #tpu.memory_space<vmem>>, %arg9: memref<1x8x8x16xf32, #tpu.memory_space<vmem>>, %arg10: memref<10x10x16xf32, #tpu.memory_space<vmem>>, %arg11: memref<10x10x16xf32, #tpu.memory_space<vmem>>) attributes {dimension_semantics = [#tpu.dimension_semantics<parallel>], iteration_bounds = array<i64: 2>, scalar_prefetch = 0 : i64, scratch_operands = 2 : i64, tpu.core_type = #tpu.core_type<tc>, window_params = [{transform_indices = @transform_0, window_bounds = array<i64: 1, 10, 10, 32>}, {transform_indices = @transform_1, window_bounds = array<i64: 1, 10, 10, 16>}, {pipeline_mode = #tpu.pipeline_mode<synchronous>, transform_indices = @transform_2, window_bounds = array<i64: 288, 16>}, {pipeline_mode = #tpu.pipeline_mode<synchronous>, transform_indices = @transform_3, window_bounds = array<i64: 1, 16>}, {pipeline_mode = #tpu.pipeline_mode<synchronous>, transform_indices = @transform_4, window_bounds = array<i64: 288, 16>}, {pipeline_mode = #tpu.pipeline_mode<synchronous>, transform_indices = @transform_5, window_bounds = array<i64: 1, 16>}, {pipeline_mode = #tpu.pipeline_mode<synchronous>, transform_indices = @transform_6, window_bounds = array<i64: 144, 16>}, {pipeline_mode = #tpu.pipeline_mode<synchronous>, transform_indices = @transform_7, window_bounds = array<i64: 1, 16>}, {transform_indices = @transform_8, window_bounds = array<i64: 1, 8, 8, 16>}]} {
    %c0 = arith.constant 0 : index
    %c0_0 = arith.constant 0 : index
    %c0_1 = arith.constant 0 : index
    %c0_2 = arith.constant 0 : index
    %0 = vector.load %arg1[%c0, %c0_0, %c0_1, %c0_2] : memref<1x10x10x32xf32, #tpu.memory_space<vmem>>, vector<1x8x8x32xf32>
    %1 = vector.shape_cast %0 : vector<1x8x8x32xf32> to vector<8x8x32xf32>
    %c0_3 = arith.constant 0 : index
    %c0_4 = arith.constant 0 : index
    %c1 = arith.constant 1 : index
    %c0_5 = arith.constant 0 : index
    %2 = vector.load %arg1[%c0_3, %c0_4, %c1, %c0_5] : memref<1x10x10x32xf32, #tpu.memory_space<vmem>>, vector<1x8x8x32xf32>
    %3 = vector.shape_cast %2 : vector<1x8x8x32xf32> to vector<8x8x32xf32>
    %c0_6 = arith.constant 0 : index
    %c0_7 = arith.constant 0 : index
    %c2 = arith.constant 2 : index
    %c0_8 = arith.constant 0 : index
    %4 = vector.load %arg1[%c0_6, %c0_7, %c2, %c0_8] : memref<1x10x10x32xf32, #tpu.memory_space<vmem>>, vector<1x8x8x32xf32>
    %5 = vector.shape_cast %4 : vector<1x8x8x32xf32> to vector<8x8x32xf32>
    %c0_9 = arith.constant 0 : index
    %c1_10 = arith.constant 1 : index
    %c0_11 = arith.constant 0 : index
    %c0_12 = arith.constant 0 : index
    %6 = vector.load %arg1[%c0_9, %c1_10, %c0_11, %c0_12] : memref<1x10x10x32xf32, #tpu.memory_space<vmem>>, vector<1x8x8x32xf32>
    %7 = vector.shape_cast %6 : vector<1x8x8x32xf32> to vector<8x8x32xf32>
    %c0_13 = arith.constant 0 : index
    %c1_14 = arith.constant 1 : index
    %c1_15 = arith.constant 1 : index
    %c0_16 = arith.constant 0 : index
    %8 = vector.load %arg1[%c0_13, %c1_14, %c1_15, %c0_16] : memref<1x10x10x32xf32, #tpu.memory_space<vmem>>, vector<1x8x8x32xf32>
    %9 = vector.shape_cast %8 : vector<1x8x8x32xf32> to vector<8x8x32xf32>
    %c0_17 = arith.constant 0 : index
    %c1_18 = arith.constant 1 : index
    %c2_19 = arith.constant 2 : index
    %c0_20 = arith.constant 0 : index
    %10 = vector.load %arg1[%c0_17, %c1_18, %c2_19, %c0_20] : memref<1x10x10x32xf32, #tpu.memory_space<vmem>>, vector<1x8x8x32xf32>
    %11 = vector.shape_cast %10 : vector<1x8x8x32xf32> to vector<8x8x32xf32>
    %c0_21 = arith.constant 0 : index
    %c2_22 = arith.constant 2 : index
    %c0_23 = arith.constant 0 : index
    %c0_24 = arith.constant 0 : index
    %12 = vector.load %arg1[%c0_21, %c2_22, %c0_23, %c0_24] : memref<1x10x10x32xf32, #tpu.memory_space<vmem>>, vector<1x8x8x32xf32>
    %13 = vector.shape_cast %12 : vector<1x8x8x32xf32> to vector<8x8x32xf32>
    %c0_25 = arith.constant 0 : index
    %c2_26 = arith.constant 2 : index
    %c1_27 = arith.constant 1 : index
    %c0_28 = arith.constant 0 : index
    %14 = vector.load %arg1[%c0_25, %c2_26, %c1_27, %c0_28] : memref<1x10x10x32xf32, #tpu.memory_space<vmem>>, vector<1x8x8x32xf32>
    %15 = vector.shape_cast %14 : vector<1x8x8x32xf32> to vector<8x8x32xf32>
    %c0_29 = arith.constant 0 : index
    %c2_30 = arith.constant 2 : index
    %c2_31 = arith.constant 2 : index
    %c0_32 = arith.constant 0 : index
    %16 = vector.load %arg1[%c0_29, %c2_30, %c2_31, %c0_32] : memref<1x10x10x32xf32, #tpu.memory_space<vmem>>, vector<1x8x8x32xf32>
    %17 = vector.shape_cast %16 : vector<1x8x8x32xf32> to vector<8x8x32xf32>
    %c0_33 = arith.constant 0 : index
    %c0_34 = arith.constant 0 : index
    %18 = vector.load %arg3[%c0_33, %c0_34] : memref<288x16xf32, #tpu.memory_space<vmem>>, vector<288x16xf32>
    %c0_35 = arith.constant 0 : index
    %c0_36 = arith.constant 0 : index
    %19 = vector.load %arg4[%c0_35, %c0_36] : memref<1x16xf32, #tpu.memory_space<vmem>>, vector<1x16xf32>
    %20 = tpu.concatenate %1, %3, %5, %7, %9, %11, %13, %15, %17 in 2 : vector<8x8x32xf32>, vector<8x8x32xf32>, vector<8x8x32xf32>, vector<8x8x32xf32>, vector<8x8x32xf32>, vector<8x8x32xf32>, vector<8x8x32xf32>, vector<8x8x32xf32>, vector<8x8x32xf32> -> vector<8x8x288xf32>
    %21 = vector.shape_cast %20 : vector<8x8x288xf32> to vector<64x288xf32>
    %cst = arith.constant dense<0.000000e+00> : vector<64x16xf32>
    %22 = tpu.matmul %21, %18, %cst {dimension_numbers = #tpu.dot_dimension_numbers<[1], [0], [0], [1], [0, 0, 1, 1], [], []>} : vector<64x288xf32>, vector<288x16xf32>, vector<64x16xf32> -> vector<64x16xf32>
    %23 = vector.broadcast %19 : vector<1x16xf32> to vector<64x16xf32>
    %24 = arith.addf %22, %23 : vector<64x16xf32>
    %cst_37 = arith.constant 0.000000e+00 : f32
    %25 = vector.broadcast %cst_37 : f32 to vector<64x16xf32>
    %26 = arith.maximumf %24, %25 : vector<64x16xf32>
    %27 = vector.shape_cast %26 : vector<64x16xf32> to vector<8x8x16xf32>
    %cst_38 = arith.constant 0.000000e+00 : f32
    %28 = vector.broadcast %cst_38 : f32 to vector<1x10x16xf32>
    %c0_39 = arith.constant 0 : index
    %c0_40 = arith.constant 0 : index
    %c0_41 = arith.constant 0 : index
    %29 = vector.load %arg10[%c0_39, %c0_40, %c0_41] : memref<10x10x16xf32, #tpu.memory_space<vmem>>, vector<1x10x16xf32>
    tpu.vector_store %arg10[%c0_39, %c0_40, %c0_41], %28 {strides = array<i32>} : memref<10x10x16xf32, #tpu.memory_space<vmem>>, vector<1x10x16xf32>,
    %cst_42 = arith.constant 0.000000e+00 : f32
    %30 = vector.broadcast %cst_42 : f32 to vector<1x10x16xf32>
    %c9 = arith.constant 9 : index
    %c0_43 = arith.constant 0 : index
    %c0_44 = arith.constant 0 : index
    %31 = vector.load %arg10[%c9, %c0_43, %c0_44] : memref<10x10x16xf32, #tpu.memory_space<vmem>>, vector<1x10x16xf32>
    tpu.vector_store %arg10[%c9, %c0_43, %c0_44], %30 {strides = array<i32>} : memref<10x10x16xf32, #tpu.memory_space<vmem>>, vector<1x10x16xf32>,
    %cst_45 = arith.constant 0.000000e+00 : f32
    %32 = vector.broadcast %cst_45 : f32 to vector<10x1x16xf32>
    %c0_46 = arith.constant 0 : index
    %c0_47 = arith.constant 0 : index
    %c0_48 = arith.constant 0 : index
    %33 = vector.load %arg10[%c0_46, %c0_47, %c0_48] : memref<10x10x16xf32, #tpu.memory_space<vmem>>, vector<10x1x16xf32>
    tpu.vector_store %arg10[%c0_46, %c0_47, %c0_48], %32 {strides = array<i32>} : memref<10x10x16xf32, #tpu.memory_space<vmem>>, vector<10x1x16xf32>,
    %cst_49 = arith.constant 0.000000e+00 : f32
    %34 = vector.broadcast %cst_49 : f32 to vector<10x1x16xf32>
    %c0_50 = arith.constant 0 : index
    %c9_51 = arith.constant 9 : index
    %c0_52 = arith.constant 0 : index
    %35 = vector.load %arg10[%c0_50, %c9_51, %c0_52] : memref<10x10x16xf32, #tpu.memory_space<vmem>>, vector<10x1x16xf32>
    tpu.vector_store %arg10[%c0_50, %c9_51, %c0_52], %34 {strides = array<i32>} : memref<10x10x16xf32, #tpu.memory_space<vmem>>, vector<10x1x16xf32>,
    %c1_53 = arith.constant 1 : index
    %c1_54 = arith.constant 1 : index
    %c0_55 = arith.constant 0 : index
    %36 = vector.load %arg10[%c1_53, %c1_54, %c0_55] : memref<10x10x16xf32, #tpu.memory_space<vmem>>, vector<8x8x16xf32>
    tpu.vector_store %arg10[%c1_53, %c1_54, %c0_55], %27 {strides = array<i32>} : memref<10x10x16xf32, #tpu.memory_space<vmem>>, vector<8x8x16xf32>,
    %c0_56 = arith.constant 0 : index
    %c0_57 = arith.constant 0 : index
    %c0_58 = arith.constant 0 : index
    %c0_59 = arith.constant 0 : index
    %37 = vector.load %arg2[%c0_56, %c0_57, %c0_58, %c0_59] : memref<1x10x10x16xf32, #tpu.memory_space<vmem>>, vector<1x8x8x16xf32>
    %38 = vector.shape_cast %37 : vector<1x8x8x16xf32> to vector<8x8x16xf32>
    %c0_60 = arith.constant 0 : index
    %c0_61 = arith.constant 0 : index
    %c0_62 = arith.constant 0 : index
    %39 = vector.load %arg10[%c0_60, %c0_61, %c0_62] : memref<10x10x16xf32, #tpu.memory_space<vmem>>, vector<8x8x16xf32>
    %c0_63 = arith.constant 0 : index
    %c0_64 = arith.constant 0 : index
    %c1_65 = arith.constant 1 : index
    %c0_66 = arith.constant 0 : index
    %40 = vector.load %arg2[%c0_63, %c0_64, %c1_65, %c0_66] : memref<1x10x10x16xf32, #tpu.memory_space<vmem>>, vector<1x8x8x16xf32>
    %41 = vector.shape_cast %40 : vector<1x8x8x16xf32> to vector<8x8x16xf32>
    %c0_67 = arith.constant 0 : index
    %c1_68 = arith.constant 1 : index
    %c0_69 = arith.constant 0 : index
    %42 = vector.load %arg10[%c0_67, %c1_68, %c0_69] : memref<10x10x16xf32, #tpu.memory_space<vmem>>, vector<8x8x16xf32>
    %c0_70 = arith.constant 0 : index
    %c0_71 = arith.constant 0 : index
    %c2_72 = arith.constant 2 : index
    %c0_73 = arith.constant 0 : index
    %43 = vector.load %arg2[%c0_70, %c0_71, %c2_72, %c0_73] : memref<1x10x10x16xf32, #tpu.memory_space<vmem>>, vector<1x8x8x16xf32>
    %44 = vector.shape_cast %43 : vector<1x8x8x16xf32> to vector<8x8x16xf32>
    %c0_74 = arith.constant 0 : index
    %c2_75 = arith.constant 2 : index
    %c0_76 = arith.constant 0 : index
    %45 = vector.load %arg10[%c0_74, %c2_75, %c0_76] : memref<10x10x16xf32, #tpu.memory_space<vmem>>, vector<8x8x16xf32>
    %c0_77 = arith.constant 0 : index
    %c1_78 = arith.constant 1 : index
    %c0_79 = arith.constant 0 : index
    %c0_80 = arith.constant 0 : index
    %46 = vector.load %arg2[%c0_77, %c1_78, %c0_79, %c0_80] : memref<1x10x10x16xf32, #tpu.memory_space<vmem>>, vector<1x8x8x16xf32>
    %47 = vector.shape_cast %46 : vector<1x8x8x16xf32> to vector<8x8x16xf32>
    %c1_81 = arith.constant 1 : index
    %c0_82 = arith.constant 0 : index
    %c0_83 = arith.constant 0 : index
    %48 = vector.load %arg10[%c1_81, %c0_82, %c0_83] : memref<10x10x16xf32, #tpu.memory_space<vmem>>, vector<8x8x16xf32>
    %c0_84 = arith.constant 0 : index
    %c1_85 = arith.constant 1 : index
    %c1_86 = arith.constant 1 : index
    %c0_87 = arith.constant 0 : index
    %49 = vector.load %arg2[%c0_84, %c1_85, %c1_86, %c0_87] : memref<1x10x10x16xf32, #tpu.memory_space<vmem>>, vector<1x8x8x16xf32>
    %50 = vector.shape_cast %49 : vector<1x8x8x16xf32> to vector<8x8x16xf32>
    %c1_88 = arith.constant 1 : index
    %c1_89 = arith.constant 1 : index
    %c0_90 = arith.constant 0 : index
    %51 = vector.load %arg10[%c1_88, %c1_89, %c0_90] : memref<10x10x16xf32, #tpu.memory_space<vmem>>, vector<8x8x16xf32>
    %c0_91 = arith.constant 0 : index
    %c1_92 = arith.constant 1 : index
    %c2_93 = arith.constant 2 : index
    %c0_94 = arith.constant 0 : index
    %52 = vector.load %arg2[%c0_91, %c1_92, %c2_93, %c0_94] : memref<1x10x10x16xf32, #tpu.memory_space<vmem>>, vector<1x8x8x16xf32>
    %53 = vector.shape_cast %52 : vector<1x8x8x16xf32> to vector<8x8x16xf32>
    %c1_95 = arith.constant 1 : index
    %c2_96 = arith.constant 2 : index
    %c0_97 = arith.constant 0 : index
    %54 = vector.load %arg10[%c1_95, %c2_96, %c0_97] : memref<10x10x16xf32, #tpu.memory_space<vmem>>, vector<8x8x16xf32>
    %c0_98 = arith.constant 0 : index
    %c2_99 = arith.constant 2 : index
    %c0_100 = arith.constant 0 : index
    %c0_101 = arith.constant 0 : index
    %55 = vector.load %arg2[%c0_98, %c2_99, %c0_100, %c0_101] : memref<1x10x10x16xf32, #tpu.memory_space<vmem>>, vector<1x8x8x16xf32>
    %56 = vector.shape_cast %55 : vector<1x8x8x16xf32> to vector<8x8x16xf32>
    %c2_102 = arith.constant 2 : index
    %c0_103 = arith.constant 0 : index
    %c0_104 = arith.constant 0 : index
    %57 = vector.load %arg10[%c2_102, %c0_103, %c0_104] : memref<10x10x16xf32, #tpu.memory_space<vmem>>, vector<8x8x16xf32>
    %c0_105 = arith.constant 0 : index
    %c2_106 = arith.constant 2 : index
    %c1_107 = arith.constant 1 : index
    %c0_108 = arith.constant 0 : index
    %58 = vector.load %arg2[%c0_105, %c2_106, %c1_107, %c0_108] : memref<1x10x10x16xf32, #tpu.memory_space<vmem>>, vector<1x8x8x16xf32>
    %59 = vector.shape_cast %58 : vector<1x8x8x16xf32> to vector<8x8x16xf32>
    %c2_109 = arith.constant 2 : index
    %c1_110 = arith.constant 1 : index
    %c0_111 = arith.constant 0 : index
    %60 = vector.load %arg10[%c2_109, %c1_110, %c0_111] : memref<10x10x16xf32, #tpu.memory_space<vmem>>, vector<8x8x16xf32>
    %c0_112 = arith.constant 0 : index
    %c2_113 = arith.constant 2 : index
    %c2_114 = arith.constant 2 : index
    %c0_115 = arith.constant 0 : index
    %61 = vector.load %arg2[%c0_112, %c2_113, %c2_114, %c0_115] : memref<1x10x10x16xf32, #tpu.memory_space<vmem>>, vector<1x8x8x16xf32>
    %62 = vector.shape_cast %61 : vector<1x8x8x16xf32> to vector<8x8x16xf32>
    %c2_116 = arith.constant 2 : index
    %c2_117 = arith.constant 2 : index
    %c0_118 = arith.constant 0 : index
    %63 = vector.load %arg10[%c2_116, %c2_117, %c0_118] : memref<10x10x16xf32, #tpu.memory_space<vmem>>, vector<8x8x16xf32>
    %c0_119 = arith.constant 0 : index
    %c0_120 = arith.constant 0 : index
    %64 = vector.load %arg5[%c0_119, %c0_120] : memref<288x16xf32, #tpu.memory_space<vmem>>, vector<288x16xf32>
    %c0_121 = arith.constant 0 : index
    %c0_122 = arith.constant 0 : index
    %65 = vector.load %arg6[%c0_121, %c0_122] : memref<1x16xf32, #tpu.memory_space<vmem>>, vector<1x16xf32>
    %66 = tpu.concatenate %38, %39, %41, %42, %44, %45, %47, %48, %50, %51, %53, %54, %56, %57, %59, %60 in 2 : vector<8x8x16xf32>, vector<8x8x16xf32>, vector<8x8x16xf32>, vector<8x8x16xf32>, vector<8x8x16xf32>, vector<8x8x16xf32>, vector<8x8x16xf32>, vector<8x8x16xf32>, vector<8x8x16xf32>, vector<8x8x16xf32>, vector<8x8x16xf32>, vector<8x8x16xf32>, vector<8x8x16xf32>, vector<8x8x16xf32>, vector<8x8x16xf32>, vector<8x8x16xf32> -> vector<8x8x256xf32>
    %67 = tpu.concatenate %62, %63 in 2 : vector<8x8x16xf32>, vector<8x8x16xf32> -> vector<8x8x32xf32>
    %68 = tpu.concatenate %66, %67 in 2 : vector<8x8x256xf32>, vector<8x8x32xf32> -> vector<8x8x288xf32>
    %69 = vector.shape_cast %68 : vector<8x8x288xf32> to vector<64x288xf32>
    %cst_123 = arith.constant dense<0.000000e+00> : vector<64x16xf32>
    %70 = tpu.matmul %69, %64, %cst_123 {dimension_numbers = #tpu.dot_dimension_numbers<[1], [0], [0], [1], [0, 0, 1, 1], [], []>} : vector<64x288xf32>, vector<288x16xf32>, vector<64x16xf32> -> vector<64x16xf32>
    %71 = vector.broadcast %65 : vector<1x16xf32> to vector<64x16xf32>
    %72 = arith.addf %70, %71 : vector<64x16xf32>
    %cst_124 = arith.constant 0.000000e+00 : f32
    %73 = vector.broadcast %cst_124 : f32 to vector<64x16xf32>
    %74 = arith.maximumf %72, %73 : vector<64x16xf32>
    %75 = vector.shape_cast %74 : vector<64x16xf32> to vector<8x8x16xf32>
    %cst_125 = arith.constant 0.000000e+00 : f32
    %76 = vector.broadcast %cst_125 : f32 to vector<1x10x16xf32>
    %c0_126 = arith.constant 0 : index
    %c0_127 = arith.constant 0 : index
    %c0_128 = arith.constant 0 : index
    %77 = vector.load %arg11[%c0_126, %c0_127, %c0_128] : memref<10x10x16xf32, #tpu.memory_space<vmem>>, vector<1x10x16xf32>
    tpu.vector_store %arg11[%c0_126, %c0_127, %c0_128], %76 {strides = array<i32>} : memref<10x10x16xf32, #tpu.memory_space<vmem>>, vector<1x10x16xf32>,
    %cst_129 = arith.constant 0.000000e+00 : f32
    %78 = vector.broadcast %cst_129 : f32 to vector<1x10x16xf32>
    %c9_130 = arith.constant 9 : index
    %c0_131 = arith.constant 0 : index
    %c0_132 = arith.constant 0 : index
    %79 = vector.load %arg11[%c9_130, %c0_131, %c0_132] : memref<10x10x16xf32, #tpu.memory_space<vmem>>, vector<1x10x16xf32>
    tpu.vector_store %arg11[%c9_130, %c0_131, %c0_132], %78 {strides = array<i32>} : memref<10x10x16xf32, #tpu.memory_space<vmem>>, vector<1x10x16xf32>,
    %cst_133 = arith.constant 0.000000e+00 : f32
    %80 = vector.broadcast %cst_133 : f32 to vector<10x1x16xf32>
    %c0_134 = arith.constant 0 : index
    %c0_135 = arith.constant 0 : index
    %c0_136 = arith.constant 0 : index
    %81 = vector.load %arg11[%c0_134, %c0_135, %c0_136] : memref<10x10x16xf32, #tpu.memory_space<vmem>>, vector<10x1x16xf32>
    tpu.vector_store %arg11[%c0_134, %c0_135, %c0_136], %80 {strides = array<i32>} : memref<10x10x16xf32, #tpu.memory_space<vmem>>, vector<10x1x16xf32>,
    %cst_137 = arith.constant 0.000000e+00 : f32
    %82 = vector.broadcast %cst_137 : f32 to vector<10x1x16xf32>
    %c0_138 = arith.constant 0 : index
    %c9_139 = arith.constant 9 : index
    %c0_140 = arith.constant 0 : index
    %83 = vector.load %arg11[%c0_138, %c9_139, %c0_140] : memref<10x10x16xf32, #tpu.memory_space<vmem>>, vector<10x1x16xf32>
    tpu.vector_store %arg11[%c0_138, %c9_139, %c0_140], %82 {strides = array<i32>} : memref<10x10x16xf32, #tpu.memory_space<vmem>>, vector<10x1x16xf32>,
    %c1_141 = arith.constant 1 : index
    %c1_142 = arith.constant 1 : index
    %c0_143 = arith.constant 0 : index
    %84 = vector.load %arg11[%c1_141, %c1_142, %c0_143] : memref<10x10x16xf32, #tpu.memory_space<vmem>>, vector<8x8x16xf32>
    tpu.vector_store %arg11[%c1_141, %c1_142, %c0_143], %75 {strides = array<i32>} : memref<10x10x16xf32, #tpu.memory_space<vmem>>, vector<8x8x16xf32>,
    %c0_144 = arith.constant 0 : index
    %c0_145 = arith.constant 0 : index
    %c0_146 = arith.constant 0 : index
    %85 = vector.load %arg11[%c0_144, %c0_145, %c0_146] : memref<10x10x16xf32, #tpu.memory_space<vmem>>, vector<8x8x16xf32>
    %c0_147 = arith.constant 0 : index
    %c1_148 = arith.constant 1 : index
    %c0_149 = arith.constant 0 : index
    %86 = vector.load %arg11[%c0_147, %c1_148, %c0_149] : memref<10x10x16xf32, #tpu.memory_space<vmem>>, vector<8x8x16xf32>
    %c0_150 = arith.constant 0 : index
    %c2_151 = arith.constant 2 : index
    %c0_152 = arith.constant 0 : index
    %87 = vector.load %arg11[%c0_150, %c2_151, %c0_152] : memref<10x10x16xf32, #tpu.memory_space<vmem>>, vector<8x8x16xf32>
    %c1_153 = arith.constant 1 : index
    %c0_154 = arith.constant 0 : index
    %c0_155 = arith.constant 0 : index
    %88 = vector.load %arg11[%c1_153, %c0_154, %c0_155] : memref<10x10x16xf32, #tpu.memory_space<vmem>>, vector<8x8x16xf32>
    %c1_156 = arith.constant 1 : index
    %c1_157 = arith.constant 1 : index
    %c0_158 = arith.constant 0 : index
    %89 = vector.load %arg11[%c1_156, %c1_157, %c0_158] : memref<10x10x16xf32, #tpu.memory_space<vmem>>, vector<8x8x16xf32>
    %c1_159 = arith.constant 1 : index
    %c2_160 = arith.constant 2 : index
    %c0_161 = arith.constant 0 : index
    %90 = vector.load %arg11[%c1_159, %c2_160, %c0_161] : memref<10x10x16xf32, #tpu.memory_space<vmem>>, vector<8x8x16xf32>
    %c2_162 = arith.constant 2 : index
    %c0_163 = arith.constant 0 : index
    %c0_164 = arith.constant 0 : index
    %91 = vector.load %arg11[%c2_162, %c0_163, %c0_164] : memref<10x10x16xf32, #tpu.memory_space<vmem>>, vector<8x8x16xf32>
    %c2_165 = arith.constant 2 : index
    %c1_166 = arith.constant 1 : index
    %c0_167 = arith.constant 0 : index
    %92 = vector.load %arg11[%c2_165, %c1_166, %c0_167] : memref<10x10x16xf32, #tpu.memory_space<vmem>>, vector<8x8x16xf32>
    %c2_168 = arith.constant 2 : index
    %c2_169 = arith.constant 2 : index
    %c0_170 = arith.constant 0 : index
    %93 = vector.load %arg11[%c2_168, %c2_169, %c0_170] : memref<10x10x16xf32, #tpu.memory_space<vmem>>, vector<8x8x16xf32>
    %c0_171 = arith.constant 0 : index
    %c0_172 = arith.constant 0 : index
    %94 = vector.load %arg7[%c0_171, %c0_172] : memref<144x16xf32, #tpu.memory_space<vmem>>, vector<144x16xf32>
    %c0_173 = arith.constant 0 : index
    %c0_174 = arith.constant 0 : index
    %95 = vector.load %arg8[%c0_173, %c0_174] : memref<1x16xf32, #tpu.memory_space<vmem>>, vector<1x16xf32>
    %96 = tpu.concatenate %85, %86, %87, %88, %89, %90, %91, %92, %93 in 2 : vector<8x8x16xf32>, vector<8x8x16xf32>, vector<8x8x16xf32>, vector<8x8x16xf32>, vector<8x8x16xf32>, vector<8x8x16xf32>, vector<8x8x16xf32>, vector<8x8x16xf32>, vector<8x8x16xf32> -> vector<8x8x144xf32>
    %97 = vector.shape_cast %96 : vector<8x8x144xf32> to vector<64x144xf32>
    %cst_175 = arith.constant dense<0.000000e+00> : vector<64x16xf32>
    %98 = tpu.matmul %97, %94, %cst_175 {dimension_numbers = #tpu.dot_dimension_numbers<[1], [0], [0], [1], [0, 0, 1, 1], [], []>} : vector<64x144xf32>, vector<144x16xf32>, vector<64x16xf32> -> vector<64x16xf32>
    %99 = vector.broadcast %95 : vector<1x16xf32> to vector<64x16xf32>
    %100 = arith.addf %98, %99 : vector<64x16xf32>
    %cst_176 = arith.constant 0.000000e+00 : f32
    %101 = vector.broadcast %cst_176 : f32 to vector<64x16xf32>
    %102 = arith.maximumf %100, %101 : vector<64x16xf32>
    %103 = vector.shape_cast %102 : vector<64x16xf32> to vector<8x8x16xf32>
    %104 = vector.shape_cast %103 : vector<8x8x16xf32> to vector<1x8x8x16xf32>
    %c0_177 = arith.constant 0 : index
    %c0_178 = arith.constant 0 : index
    %c0_179 = arith.constant 0 : index
    %c0_180 = arith.constant 0 : index
    %105 = vector.load %arg9[%c0_177, %c0_178, %c0_179, %c0_180] : memref<1x8x8x16xf32, #tpu.memory_space<vmem>>, vector<1x8x8x16xf32>
    tpu.vector_store %arg9[%c0_177, %c0_178, %c0_179, %c0_180], %104 {strides = array<i32>} : memref<1x8x8x16xf32, #tpu.memory_space<vmem>>, vector<1x8x8x16xf32>,
    return
  }
  func.func @transform_0(%arg0: i32) -> (i32, i32, i32, i32) {
    %c0_i32 = arith.constant 0 : i32
    %c0_i32_0 = arith.constant 0 : i32
    %c0_i32_1 = arith.constant 0 : i32
    %c0_i32_2 = arith.constant 0 : i32
    return %arg0, %c0_i32, %c0_i32_0, %c0_i32_1 : i32, i32, i32, i32
  }
  func.func @transform_1(%arg0: i32) -> (i32, i32, i32, i32) {
    %c0_i32 = arith.constant 0 : i32
    %c0_i32_0 = arith.constant 0 : i32
    %c0_i32_1 = arith.constant 0 : i32
    %c0_i32_2 = arith.constant 0 : i32
    return %arg0, %c0_i32, %c0_i32_0, %c0_i32_1 : i32, i32, i32, i32
  }
  func.func @transform_2(%arg0: i32) -> (i32, i32) {
    %c0_i32 = arith.constant 0 : i32
    %c0_i32_0 = arith.constant 0 : i32
    %c0_i32_1 = arith.constant 0 : i32
    return %c0_i32, %c0_i32_0 : i32, i32
  }
  func.func @transform_3(%arg0: i32) -> (i32, i32) {
    %c0_i32 = arith.constant 0 : i32
    %c0_i32_0 = arith.constant 0 : i32
    %c0_i32_1 = arith.constant 0 : i32
    return %c0_i32, %c0_i32_0 : i32, i32
  }
  func.func @transform_4(%arg0: i32) -> (i32, i32) {
    %c0_i32 = arith.constant 0 : i32
    %c0_i32_0 = arith.constant 0 : i32
    %c0_i32_1 = arith.constant 0 : i32
    return %c0_i32, %c0_i32_0 : i32, i32
  }
  func.func @transform_5(%arg0: i32) -> (i32, i32) {
    %c0_i32 = arith.constant 0 : i32
    %c0_i32_0 = arith.constant 0 : i32
    %c0_i32_1 = arith.constant 0 : i32
    return %c0_i32, %c0_i32_0 : i32, i32
  }
  func.func @transform_6(%arg0: i32) -> (i32, i32) {
    %c0_i32 = arith.constant 0 : i32
    %c0_i32_0 = arith.constant 0 : i32
    %c0_i32_1 = arith.constant 0 : i32
    return %c0_i32, %c0_i32_0 : i32, i32
  }
  func.func @transform_7(%arg0: i32) -> (i32, i32) {
    %c0_i32 = arith.constant 0 : i32
    %c0_i32_0 = arith.constant 0 : i32
    %c0_i32_1 = arith.constant 0 : i32
    return %c0_i32, %c0_i32_0 : i32, i32
  }
  func.func @transform_8(%arg0: i32) -> (i32, i32, i32, i32) {
    %c0_i32 = arith.constant 0 : i32
    %c0_i32_0 = arith.constant 0 : i32
    %c0_i32_1 = arith.constant 0 : i32
    %c0_i32_2 = arith.constant 0 : i32
    return %arg0, %c0_i32, %c0_i32_0, %c0_i32_1 : i32, i32, i32, i32
  }
}

</mosaic_0001>

<llo_original>
// kernel: tpu_custom_call.1
$region0: #{tpu_custom_call.1}
  #allocation0 [shape = 'u32[]', space=smem, size = 0x4, offset = 0x4, fixed_abs, tag = 'smem constant byte address 0x4 - core index']
  #allocation1 [shape = 'u32[72,128]{1,0:T(1,128)}', space=vmem, size = 0x9000, scoped, tag = 'internal scratch']
  #allocation2 [shape = 'f32[10,10,16]{2,1,0:T(8,128)}', space=vmem, size = 0x14000, scoped, tag = 'scratch operand']
  #allocation3 [shape = 'f32[10,10,16]{2,1,0:T(8,128)}', space=vmem, size = 0x14000, scoped, tag = 'scratch operand']
  %s0 = inlined_call_operand.vmem [shape: f32[2,10,10,32], index: 0, kind: input, shape index: {}]
  %s1 = inlined_call_operand.vmem [shape: f32[2,10,10,16], index: 1, kind: input, shape index: {}]
  %s2 = inlined_call_operand.vmem [shape: f32[288,16], index: 2, kind: input, shape index: {}]
  %s3 = inlined_call_operand.vmem [shape: f32[1,16], index: 3, kind: input, shape index: {}]
  %s4 = inlined_call_operand.vmem [shape: f32[288,16], index: 4, kind: input, shape index: {}]
  %s5 = inlined_call_operand.vmem [shape: f32[1,16], index: 5, kind: input, shape index: {}]
  %s6 = inlined_call_operand.vmem [shape: f32[144,16], index: 6, kind: input, shape index: {}]
  %s7 = inlined_call_operand.vmem [shape: f32[1,16], index: 7, kind: input, shape index: {}]
  %s8 = inlined_call_operand.hbm [shape: f32[2,8,8,16], index: 8, kind: output, shape index: {}]
  %s9 = sld [smem:[#allocation0]]
  $region65: #{tpu_custom_call.1} parent=0
    _
  %s11 = ssub.s32 1, %s9
  %s12 = scalar_select 0, %s11, %s9
  $region1: #{tpu_custom_call.1} parent=0
    #allocation4 [shape = 'u8[65536]{0}', space=vmem, size = 0x10000, scoped, tag = 'output window, operand 0']
    #allocation5 [shape = 's32[2]{0}', space=sflag, size = 0x8, scoped, tag = 'scoped memory for tpu_custom_call.1']
    %13 = vsyncpa [#allocation5], 0
    %s14 = scalar_lea.sflag [#allocation5], 1
    %15 = vsyncpa %s14, 0
    loop: start=0, step=1, limit=4
    $region2: #{tpu_custom_call.1} parent=1 // loop_pre_header
      _
    $region3: #{tpu_custom_call.1} parent=1 // loop_header
      %s17 = sphi 0, %s21
      %p18 = scmp.ge.s32.totalorder %s17, 4
      %s27 = sphi 0, %s29
      %s30 = sphi 0, %s27
      %s31 = sphi 0, %s30
      %s47 = sphi 0, %s31
      %s53 = sphi 0, %s55
      %s56 = sphi 0, %s53
      %s57 = sphi 0, %s56
      %s73 = sphi 0, %s57
      %s77 = sphi 0, %s77
      %s79 = sphi 0, %s77
      %s80 = sphi 0, %s79
      %s94 = sphi 0, %s80
      %s98 = sphi 0, %s98
      %s100 = sphi 0, %s98
      %s101 = sphi 0, %s100
      %s115 = sphi 0, %s101
      %s119 = sphi 0, %s119
      %s121 = sphi 0, %s119
      %s122 = sphi 0, %s121
      %s136 = sphi 0, %s122
      %s140 = sphi 0, %s140
      %s142 = sphi 0, %s140
      %s143 = sphi 0, %s142
      %s157 = sphi 0, %s143
      %s161 = sphi 0, %s161
      %s163 = sphi 0, %s161
      %s164 = sphi 0, %s163
      %s178 = sphi 0, %s164
      %s182 = sphi 0, %s182
      %s184 = sphi 0, %s182
      %s185 = sphi 0, %s184
      %s199 = sphi 0, %s185
      %s205 = sphi 0, %s207
      %s208 = sphi 0, %s205
      %s209 = sphi 0, %s208
      %s225 = sphi 0, %s209
    $region4: #{tpu_custom_call.1} parent=1 // loop_header_branch
      %20 = sbr.rel (%p18) target = $region8
    $region5: #{tpu_custom_call.1} parent=1 // loop_body
      %s22 = ssub.s32 %s17, 1
      %s23 = ssub.s32 %s17, 2
      %s24 = sadd.s32 %s17, 1
      %s25 = ssub.s32 %s17, %s24
      %p26 = scmp.eq.s32.totalorder %s25, 0
      %s28 = sadd.s32 %s27, 1
      %s29 = scalar_select %p26, %s27, %s28
      %p32 = pneg %p26
      %p33 = scmp.eq.s32.totalorder %s17, 1
      %p34 = por %p32, %p33
      %p35 = scmp.ne.s32.totalorder %s27, %s30
      %p36 = scmp.eq.s32.totalorder %s17, 0
      %p37 = por %p35, %p36
      %p38 = scmp.ne.s32.totalorder %s27, %s30
      %p39 = scmp.eq.s32.totalorder %s22, 1
      %p40 = por %p38, %p39
      %p41 = scmp.ne.s32.totalorder %s30, %s31
      %p42 = scmp.eq.s32.totalorder %s22, 0
      %p43 = por %p41, %p42
      %p44 = scmp.ne.s32.totalorder %s30, %s31
      %p45 = scmp.eq.s32.totalorder %s23, 1
      %p46 = por %p44, %p45
      %p48 = scmp.ne.s32.totalorder %s31, %s47
      %p49 = scmp.eq.s32.totalorder %s23, 0
      %p50 = por %p48, %p49
      %s51 = ssub.s32 %s17, %s24
      %p52 = scmp.eq.s32.totalorder %s51, 0
      %s54 = sadd.s32 %s53, 1
      %s55 = scalar_select %p52, %s53, %s54
      %p58 = pneg %p52
      %p59 = scmp.eq.s32.totalorder %s17, 1
      %p60 = por %p58, %p59
      %p61 = scmp.ne.s32.totalorder %s53, %s56
      %p62 = scmp.eq.s32.totalorder %s17, 0
      %p63 = por %p61, %p62
      %p64 = scmp.ne.s32.totalorder %s53, %s56
      %p65 = scmp.eq.s32.totalorder %s22, 1
      %p66 = por %p64, %p65
      %p67 = scmp.ne.s32.totalorder %s56, %s57
      %p68 = scmp.eq.s32.totalorder %s22, 0
      %p69 = por %p67, %p68
      %p70 = scmp.ne.s32.totalorder %s56, %s57
      %p71 = scmp.eq.s32.totalorder %s23, 1
      %p72 = por %p70, %p71
      %p74 = scmp.ne.s32.totalorder %s57, %s73
      %p75 = scmp.eq.s32.totalorder %s23, 0
      %p76 = por %p74, %p75
      %s78 = sadd.s32 %s77, 1
      %p81 = scmp.eq.s32.totalorder %s17, 1
      %p82 = scmp.ne.s32.totalorder %s77, %s79
      %p83 = scmp.eq.s32.totalorder %s17, 0
      %p84 = por %p82, %p83
      %p85 = scmp.ne.s32.totalorder %s77, %s79
      %p86 = scmp.eq.s32.totalorder %s22, 1
      %p87 = por %p85, %p86
      %p88 = scmp.ne.s32.totalorder %s79, %s80
      %p89 = scmp.eq.s32.totalorder %s22, 0
      %p90 = por %p88, %p89
      %p91 = scmp.ne.s32.totalorder %s79, %s80
      %p92 = scmp.eq.s32.totalorder %s23, 1
      %p93 = por %p91, %p92
      %p95 = scmp.ne.s32.totalorder %s80, %s94
      %p96 = scmp.eq.s32.totalorder %s23, 0
      %p97 = por %p95, %p96
      %s99 = sadd.s32 %s98, 1
      %p102 = scmp.eq.s32.totalorder %s17, 1
      %p103 = scmp.ne.s32.totalorder %s98, %s100
      %p104 = scmp.eq.s32.totalorder %s17, 0
      %p105 = por %p103, %p104
      %p106 = scmp.ne.s32.totalorder %s98, %s100
      %p107 = scmp.eq.s32.totalorder %s22, 1
      %p108 = por %p106, %p107
      %p109 = scmp.ne.s32.totalorder %s100, %s101
      %p110 = scmp.eq.s32.totalorder %s22, 0
      %p111 = por %p109, %p110
      %p112 = scmp.ne.s32.totalorder %s100, %s101
      %p113 = scmp.eq.s32.totalorder %s23, 1
      %p114 = por %p112, %p113
      %p116 = scmp.ne.s32.totalorder %s101, %s115
      %p117 = scmp.eq.s32.totalorder %s23, 0
      %p118 = por %p116, %p117
      %s120 = sadd.s32 %s119, 1
      %p123 = scmp.eq.s32.totalorder %s17, 1
      %p124 = scmp.ne.s32.totalorder %s119, %s121
      %p125 = scmp.eq.s32.totalorder %s17, 0
      %p126 = por %p124, %p125
      %p127 = scmp.ne.s32.totalorder %s119, %s121
      %p128 = scmp.eq.s32.totalorder %s22, 1
      %p129 = por %p127, %p128
      %p130 = scmp.ne.s32.totalorder %s121, %s122
      %p131 = scmp.eq.s32.totalorder %s22, 0
      %p132 = por %p130, %p131
      %p133 = scmp.ne.s32.totalorder %s121, %s122
      %p134 = scmp.eq.s32.totalorder %s23, 1
      %p135 = por %p133, %p134
      %p137 = scmp.ne.s32.totalorder %s122, %s136
      %p138 = scmp.eq.s32.totalorder %s23, 0
      %p139 = por %p137, %p138
      %s141 = sadd.s32 %s140, 1
      %p144 = scmp.eq.s32.totalorder %s17, 1
      %p145 = scmp.ne.s32.totalorder %s140, %s142
      %p146 = scmp.eq.s32.totalorder %s17, 0
      %p147 = por %p145, %p146
      %p148 = scmp.ne.s32.totalorder %s140, %s142
      %p149 = scmp.eq.s32.totalorder %s22, 1
      %p150 = por %p148, %p149
      %p151 = scmp.ne.s32.totalorder %s142, %s143
      %p152 = scmp.eq.s32.totalorder %s22, 0
      %p153 = por %p151, %p152
      %p154 = scmp.ne.s32.totalorder %s142, %s143
      %p155 = scmp.eq.s32.totalorder %s23, 1
      %p156 = por %p154, %p155
      %p158 = scmp.ne.s32.totalorder %s143, %s157
      %p159 = scmp.eq.s32.totalorder %s23, 0
      %p160 = por %p158, %p159
      %s162 = sadd.s32 %s161, 1
      %p165 = scmp.eq.s32.totalorder %s17, 1
      %p166 = scmp.ne.s32.totalorder %s161, %s163
      %p167 = scmp.eq.s32.totalorder %s17, 0
      %p168 = por %p166, %p167
      %p169 = scmp.ne.s32.totalorder %s161, %s163
      %p170 = scmp.eq.s32.totalorder %s22, 1
      %p171 = por %p169, %p170
      %p172 = scmp.ne.s32.totalorder %s163, %s164
      %p173 = scmp.eq.s32.totalorder %s22, 0
      %p174 = por %p172, %p173
      %p175 = scmp.ne.s32.totalorder %s163, %s164
      %p176 = scmp.eq.s32.totalorder %s23, 1
      %p177 = por %p175, %p176
      %p179 = scmp.ne.s32.totalorder %s164, %s178
      %p180 = scmp.eq.s32.totalorder %s23, 0
      %p181 = por %p179, %p180
      %s183 = sadd.s32 %s182, 1
      %p186 = scmp.eq.s32.totalorder %s17, 1
      %p187 = scmp.ne.s32.totalorder %s182, %s184
      %p188 = scmp.eq.s32.totalorder %s17, 0
      %p189 = por %p187, %p188
      %p190 = scmp.ne.s32.totalorder %s182, %s184
      %p191 = scmp.eq.s32.totalorder %s22, 1
      %p192 = por %p190, %p191
      %p193 = scmp.ne.s32.totalorder %s184, %s185
      %p194 = scmp.eq.s32.totalorder %s22, 0
      %p195 = por %p193, %p194
      %p196 = scmp.ne.s32.totalorder %s184, %s185
      %p197 = scmp.eq.s32.totalorder %s23, 1
      %p198 = por %p196, %p197
      %p200 = scmp.ne.s32.totalorder %s185, %s199
      %p201 = scmp.eq.s32.totalorder %s23, 0
      %p202 = por %p200, %p201
      %s203 = ssub.s32 %s17, %s24
      %p204 = scmp.eq.s32.totalorder %s203, 0
      %s206 = sadd.s32 %s205, 1
      %s207 = scalar_select %p204, %s205, %s206
      %p210 = pneg %p204
      %p211 = scmp.eq.s32.totalorder %s17, 1
      %p212 = por %p210, %p211
      %p213 = scmp.ne.s32.totalorder %s205, %s208
      %p214 = scmp.eq.s32.totalorder %s17, 0
      %p215 = por %p213, %p214
      %p216 = scmp.ne.s32.totalorder %s205, %s208
      %p217 = scmp.eq.s32.totalorder %s22, 1
      %p218 = por %p216, %p217
      %p219 = scmp.ne.s32.totalorder %s208, %s209
      %p220 = scmp.eq.s32.totalorder %s22, 0
      %p221 = por %p219, %p220
      %p222 = scmp.ne.s32.totalorder %s208, %s209
      %p223 = scmp.eq.s32.totalorder %s23, 1
      %p224 = por %p222, %p223
      %p226 = scmp.ne.s32.totalorder %s209, %s225
      %p227 = scmp.eq.s32.totalorder %s23, 0
      %p228 = por %p226, %p227
      %p229 = scmp.le.s32.totalorder 1, %s17
      %p230 = scmp.lt.s32.totalorder %s17, 3
      %p231 = pnand %p229, %p230
      %p232 = pneg %p231
      // Predicated region
      $region9: #{tpu_custom_call.1} parent=5 // pred_check
        _
      $region10: #{tpu_custom_call.1} parent=5 // pred_check_branch
        %234 = sbr.rel (%p231) target = $region12
      $region11: #{tpu_custom_call.1} parent=5 // pred_region
        %s235 = ssub.s32 %s17, 1
        // Predicated region
        $region13: #{tpu_custom_call.1} parent=11 // pred_check
          %p236 = pneg %p90
        $region14: #{tpu_custom_call.1} parent=11 // pred_check_branch
          %238 = sbr.rel (%p236) target = $region16
        $region15: #{tpu_custom_call.1} parent=11 // pred_region
          _
        $region16: #{tpu_custom_call.1} parent=11 // pred_fallthru
          _
        // Predicated region
        $region17: #{tpu_custom_call.1} parent=11 // pred_check
          %p239 = pneg %p111
        $region18: #{tpu_custom_call.1} parent=11 // pred_check_branch
          %241 = sbr.rel (%p239) target = $region20
        $region19: #{tpu_custom_call.1} parent=11 // pred_region
          _
        $region20: #{tpu_custom_call.1} parent=11 // pred_fallthru
          _
        // Predicated region
        $region21: #{tpu_custom_call.1} parent=11 // pred_check
          %p242 = pneg %p132
        $region22: #{tpu_custom_call.1} parent=11 // pred_check_branch
          %244 = sbr.rel (%p242) target = $region24
        $region23: #{tpu_custom_call.1} parent=11 // pred_region
          _
        $region24: #{tpu_custom_call.1} parent=11 // pred_fallthru
          _
        // Predicated region
        $region25: #{tpu_custom_call.1} parent=11 // pred_check
          %p245 = pneg %p153
        $region26: #{tpu_custom_call.1} parent=11 // pred_check_branch
          %247 = sbr.rel (%p245) target = $region28
        $region27: #{tpu_custom_call.1} parent=11 // pred_region
          _
        $region28: #{tpu_custom_call.1} parent=11 // pred_fallthru
          _
        // Predicated region
        $region29: #{tpu_custom_call.1} parent=11 // pred_check
          %p248 = pneg %p174
        $region30: #{tpu_custom_call.1} parent=11 // pred_check_branch
          %250 = sbr.rel (%p248) target = $region32
        $region31: #{tpu_custom_call.1} parent=11 // pred_region
          _
        $region32: #{tpu_custom_call.1} parent=11 // pred_fallthru
          _
        // Predicated region
        $region33: #{tpu_custom_call.1} parent=11 // pred_check
          %p251 = pneg %p195
        $region34: #{tpu_custom_call.1} parent=11 // pred_check_branch
          %253 = sbr.rel (%p251) target = $region36
        $region35: #{tpu_custom_call.1} parent=11 // pred_region
          _
        $region36: #{tpu_custom_call.1} parent=11 // pred_fallthru
          _
      $region12: #{tpu_custom_call.1} parent=5 // pred_fallthru
        _
      %p254 = scmp.lt.s32.totalorder %s17, 2
      // Predicated region
      $region37: #{tpu_custom_call.1} parent=5 // pred_check
        %p255 = pneg %p254
      $region38: #{tpu_custom_call.1} parent=5 // pred_check_branch
        %257 = sbr.rel (%p255) target = $region40
      $region39: #{tpu_custom_call.1} parent=5 // pred_region
        // Predicated region
        $region41: #{tpu_custom_call.1} parent=39 // pred_check
          %p258 = pneg %p37
        $region42: #{tpu_custom_call.1} parent=39 // pred_check_branch
          %260 = sbr.rel (%p258) target = $region44
        $region43: #{tpu_custom_call.1} parent=39 // pred_region
          %p261 = scmp.lt.s32.totalorder %s17, 1
          %s262 = scalar_select %p261, %s17, 1
          %s263 = smul.addr %s262, 20
          %s264 = smul.addr %s263, 8
          %s265 = scalar_lea.vmem %s0, %s264
        $region44: #{tpu_custom_call.1} parent=39 // pred_fallthru
          _
        // Predicated region
        $region45: #{tpu_custom_call.1} parent=39 // pred_check
          %p266 = pneg %p63
        $region46: #{tpu_custom_call.1} parent=39 // pred_check_branch
          %268 = sbr.rel (%p266) target = $region48
        $region47: #{tpu_custom_call.1} parent=39 // pred_region
          %p269 = scmp.lt.s32.totalorder %s17, 1
          %s270 = scalar_select %p269, %s17, 1
          %s271 = smul.addr %s270, 20
          %s272 = smul.addr %s271, 8
          %s273 = scalar_lea.vmem %s1, %s272
        $region48: #{tpu_custom_call.1} parent=39 // pred_fallthru
          _
      $region40: #{tpu_custom_call.1} parent=5 // pred_fallthru
        _
      %p274 = scmp.le.s32.totalorder 1, %s17
      %p275 = scmp.lt.s32.totalorder %s17, 3
      %p276 = pnand %p274, %p275
      %p277 = pneg %p276
      // Predicated region
      $region49: #{tpu_custom_call.1} parent=5 // pred_check
        _
      $region50: #{tpu_custom_call.1} parent=5 // pred_check_branch
        %279 = sbr.rel (%p276) target = $region52
      $region51: #{tpu_custom_call.1} parent=5 // pred_region
        %s280 = ssub.s32 %s17, 1
        %p281 = scmp.lt.s32.totalorder %s22, 1
        %s282 = scalar_select %p281, %s22, 1
        %s283 = smul.addr %s282, 20
        %s284 = smul.addr %s283, 8
        %s285 = scalar_lea.vmem %s0, %s284
        %p286 = pneg %p43
        %p287 = pneg %p40
        %p288 = scmp.lt.s32.totalorder %s22, 1
        %s289 = scalar_select %p288, %s22, 1
        %s290 = smul.addr %s289, 20
        %s291 = smul.addr %s290, 8
        %s292 = scalar_lea.vmem %s1, %s291
        %p293 = pneg %p69
        %p294 = pneg %p66
        %p295 = pneg %p90
        %p296 = pneg %p87
        %p297 = pneg %p111
        %p298 = pneg %p108
        %p299 = pneg %p132
        %p300 = pneg %p129
        %p301 = pneg %p153
        %p302 = pneg %p150
        %p303 = pneg %p174
        %p304 = pneg %p171
        %p305 = pneg %p195
        %p306 = pneg %p192
        %p307 = pneg %p221
        %p308 = pneg %p218
        %s309 = sand.u32 %s208, 1
        %s310 = scalar_lea.sflag [#allocation5], %s309
        %s311 = sand.u32 %s208, 1
        %s312 = smul.addr %s311, 64
        %s313 = scalar_lea.vmem [#allocation4], %s312
        %p314 = scmp.lt.s32.totalorder %s22, 1
        %s315 = scalar_select %p314, %s22, 1
        %s316 = smul.addr %s315, 20
        %s317 = smul.addr %s316, 8
        %s318 = scalar_lea.vmem %s0, %s317
        %p319 = scmp.lt.s32.totalorder %s22, 1
        %s320 = scalar_select %p319, %s22, 1
        %s321 = smul.addr %s320, 20
        %s322 = smul.addr %s321, 8
        %s323 = scalar_lea.vmem %s1, %s322
        %v324 = vld [vmem:[%s318] sm:$0xff]
        %v325 = vld [vmem:[%s318 + $0x10] sm:$0xff]
        %v326 = vld [vmem:[%s318 + $0x20] sm:$0xff]
        %v327 = vld [vmem:[%s318 + $0x30] sm:$0xff]
        %v328 = vld [vmem:[%s318 + $0x40] sm:$0xff]
        %v329 = vld [vmem:[%s318 + $0x50] sm:$0xff]
        %v330 = vld [vmem:[%s318 + $0x60] sm:$0xff]
        %v331 = vld [vmem:[%s318 + $0x70] sm:$0xff]
        %v332 = vld [vmem:[%s318 + $0x1] sm:$0xff]
        %v333 = vld [vmem:[%s318 + $0x11] sm:$0xff]
        %v334 = vld [vmem:[%s318 + $0x21] sm:$0xff]
        %v335 = vld [vmem:[%s318 + $0x31] sm:$0xff]
        %v336 = vld [vmem:[%s318 + $0x41] sm:$0xff]
        %v337 = vld [vmem:[%s318 + $0x51] sm:$0xff]
        %v338 = vld [vmem:[%s318 + $0x61] sm:$0xff]
        %v339 = vld [vmem:[%s318 + $0x71] sm:$0xff]
        %v340 = vld [vmem:[%s318 + $0x2] sm:$0xff]
        %v341 = vld [vmem:[%s318 + $0x12] sm:$0xff]
        %v342 = vld [vmem:[%s318 + $0x22] sm:$0xff]
        %v343 = vld [vmem:[%s318 + $0x32] sm:$0xff]
        %v344 = vld [vmem:[%s318 + $0x42] sm:$0xff]
        %v345 = vld [vmem:[%s318 + $0x52] sm:$0xff]
        %v346 = vld [vmem:[%s318 + $0x62] sm:$0xff]
        %v347 = vld [vmem:[%s318 + $0x72] sm:$0xff]
        %s348 = scalar_lea.vmem %s318, 16
        %v349 = vld [vmem:[%s348] sm:$0xff]
        %v350 = vld [vmem:[%s348 + $0x10] sm:$0xff]
        %v351 = vld [vmem:[%s348 + $0x20] sm:$0xff]
        %v352 = vld [vmem:[%s348 + $0x30] sm:$0xff]
        %v353 = vld [vmem:[%s348 + $0x40] sm:$0xff]
        %v354 = vld [vmem:[%s348 + $0x50] sm:$0xff]
        %v355 = vld [vmem:[%s348 + $0x60] sm:$0xff]
        %v356 = vld [vmem:[%s348 + $0x70] sm:$0xff]
        %v357 = vld [vmem:[%s348 + $0x1] sm:$0xff]
        %v358 = vld [vmem:[%s348 + $0x11] sm:$0xff]
        %v359 = vld [vmem:[%s348 + $0x21] sm:$0xff]
        %v360 = vld [vmem:[%s348 + $0x31] sm:$0xff]
        %v361 = vld [vmem:[%s348 + $0x41] sm:$0xff]
        %v362 = vld [vmem:[%s348 + $0x51] sm:$0xff]
        %v363 = vld [vmem:[%s348 + $0x61] sm:$0xff]
        %v364 = vld [vmem:[%s348 + $0x71] sm:$0xff]
        %v365 = vld [vmem:[%s348 + $0x2] sm:$0xff]
        %v366 = vld [vmem:[%s348 + $0x12] sm:$0xff]
        %v367 = vld [vmem:[%s348 + $0x22] sm:$0xff]
        %v368 = vld [vmem:[%s348 + $0x32] sm:$0xff]
        %v369 = vld [vmem:[%s348 + $0x42] sm:$0xff]
        %v370 = vld [vmem:[%s348 + $0x52] sm:$0xff]
        %v371 = vld [vmem:[%s348 + $0x62] sm:$0xff]
        %v372 = vld [vmem:[%s348 + $0x72] sm:$0xff]
        %s373 = scalar_lea.vmem %s318, 32
        %v374 = vld [vmem:[%s373] sm:$0xff]
        %v375 = vld [vmem:[%s373 + $0x10] sm:$0xff]
        %v376 = vld [vmem:[%s373 + $0x20] sm:$0xff]
        %v377 = vld [vmem:[%s373 + $0x30] sm:$0xff]
        %v378 = vld [vmem:[%s373 + $0x40] sm:$0xff]
        %v379 = vld [vmem:[%s373 + $0x50] sm:$0xff]
        %v380 = vld [vmem:[%s373 + $0x60] sm:$0xff]
        %v381 = vld [vmem:[%s373 + $0x70] sm:$0xff]
        %v382 = vld [vmem:[%s373 + $0x1] sm:$0xff]
        %v383 = vld [vmem:[%s373 + $0x11] sm:$0xff]
        %v384 = vld [vmem:[%s373 + $0x21] sm:$0xff]
        %v385 = vld [vmem:[%s373 + $0x31] sm:$0xff]
        %v386 = vld [vmem:[%s373 + $0x41] sm:$0xff]
        %v387 = vld [vmem:[%s373 + $0x51] sm:$0xff]
        %v388 = vld [vmem:[%s373 + $0x61] sm:$0xff]
        %v389 = vld [vmem:[%s373 + $0x71] sm:$0xff]
        %v390 = vld [vmem:[%s373 + $0x2] sm:$0xff]
        %v391 = vld [vmem:[%s373 + $0x12] sm:$0xff]
        %v392 = vld [vmem:[%s373 + $0x22] sm:$0xff]
        %v393 = vld [vmem:[%s373 + $0x32] sm:$0xff]
        %v394 = vld [vmem:[%s373 + $0x42] sm:$0xff]
        %v395 = vld [vmem:[%s373 + $0x52] sm:$0xff]
        %v396 = vld [vmem:[%s373 + $0x62] sm:$0xff]
        %v397 = vld [vmem:[%s373 + $0x72] sm:$0xff]
        %v398 = vld [vmem:[%s2] sm:$0xff]
        %v399 = vld [vmem:[%s2 + $0x8] sm:$0xff]
        %v400 = vld [vmem:[%s2 + $0x10] sm:$0xff]
        %v401 = vld [vmem:[%s2 + $0x18] sm:$0xff]
        %v402 = vld [vmem:[%s2 + $0x20] sm:$0xff]
        %v403 = vld [vmem:[%s2 + $0x28] sm:$0xff]
        %v404 = vld [vmem:[%s2 + $0x30] sm:$0xff]
        %v405 = vld [vmem:[%s2 + $0x38] sm:$0xff]
        %v406 = vld [vmem:[%s2 + $0x40] sm:$0xff]
        %v407 = vld [vmem:[%s2 + $0x48] sm:$0xff]
        %v408 = vld [vmem:[%s2 + $0x50] sm:$0xff]
        %v409 = vld [vmem:[%s2 + $0x58] sm:$0xff]
        %v410 = vld [vmem:[%s2 + $0x60] sm:$0xff]
        %v411 = vld [vmem:[%s2 + $0x68] sm:$0xff]
        %v412 = vld [vmem:[%s2 + $0x70] sm:$0xff]
        %v413 = vld [vmem:[%s2 + $0x78] sm:$0xff]
        %v414 = vld [vmem:[%s2 + $0x80] sm:$0xff]
        %v415 = vld [vmem:[%s2 + $0x88] sm:$0xff]
        %v416 = vld [vmem:[%s2 + $0x90] sm:$0xff]
        %v417 = vld [vmem:[%s2 + $0x98] sm:$0xff]
        %v418 = vld [vmem:[%s2 + $0xa0] sm:$0xff]
        %v419 = vld [vmem:[%s2 + $0xa8] sm:$0xff]
        %v420 = vld [vmem:[%s2 + $0xb0] sm:$0xff]
        %v421 = vld [vmem:[%s2 + $0xb8] sm:$0xff]
        %v422 = vld [vmem:[%s2 + $0xc0] sm:$0xff]
        %v423 = vld [vmem:[%s2 + $0xc8] sm:$0xff]
        %v424 = vld [vmem:[%s2 + $0xd0] sm:$0xff]
        %v425 = vld [vmem:[%s2 + $0xd8] sm:$0xff]
        %v426 = vld [vmem:[%s2 + $0xe0] sm:$0xff]
        %v427 = vld [vmem:[%s2 + $0xe8] sm:$0xff]
        %v428 = vld [vmem:[%s2 + $0xf0] sm:$0xff]
        %v429 = vld [vmem:[%s2 + $0xf8] sm:$0xff]
        %v430 = vld [vmem:[%s2 + $0x100] sm:$0xff]
        %v431 = vld [vmem:[%s2 + $0x108] sm:$0xff]
        %v432 = vld [vmem:[%s2 + $0x110] sm:$0xff]
        %v433 = vld [vmem:[%s2 + $0x118] sm:$0xff]
        %v434 = vld [vmem:[%s3] sm:$0x1]
        %443 = vrot.lane.b32.xlu0 %v332, 32
        %v444 = vpop.permute.xlu0 %443
        %445 = vrot.lane.b32.xlu0 %v333, 32
        %v446 = vpop.permute.xlu0 %445
        %447 = vrot.lane.b32.xlu0 %v334, 32
        %v448 = vpop.permute.xlu0 %447
        %449 = vrot.lane.b32.xlu0 %v335, 32
        %v450 = vpop.permute.xlu0 %449
        %451 = vrot.lane.b32.xlu0 %v336, 32
        %v452 = vpop.permute.xlu0 %451
        %453 = vrot.lane.b32.xlu0 %v337, 32
        %v454 = vpop.permute.xlu0 %453
        %455 = vrot.lane.b32.xlu0 %v338, 32
        %v456 = vpop.permute.xlu0 %455
        %457 = vrot.lane.b32.xlu0 %v339, 32
        %v458 = vpop.permute.xlu0 %457
        %475 = vrot.lane.b32.xlu0 %v340, 64
        %v476 = vpop.permute.xlu0 %475
        %477 = vrot.lane.b32.xlu0 %v341, 64
        %v478 = vpop.permute.xlu0 %477
        %479 = vrot.lane.b32.xlu0 %v342, 64
        %v480 = vpop.permute.xlu0 %479
        %481 = vrot.lane.b32.xlu0 %v343, 64
        %v482 = vpop.permute.xlu0 %481
        %483 = vrot.lane.b32.xlu0 %v344, 64
        %v484 = vpop.permute.xlu0 %483
        %485 = vrot.lane.b32.xlu0 %v345, 64
        %v486 = vpop.permute.xlu0 %485
        %487 = vrot.lane.b32.xlu0 %v346, 64
        %v488 = vpop.permute.xlu0 %487
        %489 = vrot.lane.b32.xlu0 %v347, 64
        %v490 = vpop.permute.xlu0 %489
        %507 = vrot.lane.b32.xlu0 %v349, 96
        %v508 = vpop.permute.xlu0 %507
        %509 = vrot.lane.b32.xlu0 %v350, 96
        %v510 = vpop.permute.xlu0 %509
        %511 = vrot.lane.b32.xlu0 %v351, 96
        %v512 = vpop.permute.xlu0 %511
        %513 = vrot.lane.b32.xlu0 %v352, 96
        %v514 = vpop.permute.xlu0 %513
        %515 = vrot.lane.b32.xlu0 %v353, 96
        %v516 = vpop.permute.xlu0 %515
        %517 = vrot.lane.b32.xlu0 %v354, 96
        %v518 = vpop.permute.xlu0 %517
        %519 = vrot.lane.b32.xlu0 %v355, 96
        %v520 = vpop.permute.xlu0 %519
        %521 = vrot.lane.b32.xlu0 %v356, 96
        %v522 = vpop.permute.xlu0 %521
        %539 = vrot.lane.b32.xlu0 %v365, 32
        %v540 = vpop.permute.xlu0 %539
        %541 = vrot.lane.b32.xlu0 %v366, 32
        %v542 = vpop.permute.xlu0 %541
        %543 = vrot.lane.b32.xlu0 %v367, 32
        %v544 = vpop.permute.xlu0 %543
        %545 = vrot.lane.b32.xlu0 %v368, 32
        %v546 = vpop.permute.xlu0 %545
        %547 = vrot.lane.b32.xlu0 %v369, 32
        %v548 = vpop.permute.xlu0 %547
        %549 = vrot.lane.b32.xlu0 %v370, 32
        %v550 = vpop.permute.xlu0 %549
        %551 = vrot.lane.b32.xlu0 %v371, 32
        %v552 = vpop.permute.xlu0 %551
        %553 = vrot.lane.b32.xlu0 %v372, 32
        %v554 = vpop.permute.xlu0 %553
        %571 = vrot.lane.b32.xlu0 %v374, 64
        %v572 = vpop.permute.xlu0 %571
        %573 = vrot.lane.b32.xlu0 %v375, 64
        %v574 = vpop.permute.xlu0 %573
        %575 = vrot.lane.b32.xlu0 %v376, 64
        %v576 = vpop.permute.xlu0 %575
        %577 = vrot.lane.b32.xlu0 %v377, 64
        %v578 = vpop.permute.xlu0 %577
        %579 = vrot.lane.b32.xlu0 %v378, 64
        %v580 = vpop.permute.xlu0 %579
        %581 = vrot.lane.b32.xlu0 %v379, 64
        %v582 = vpop.permute.xlu0 %581
        %583 = vrot.lane.b32.xlu0 %v380, 64
        %v584 = vpop.permute.xlu0 %583
        %585 = vrot.lane.b32.xlu0 %v381, 64
        %v586 = vpop.permute.xlu0 %585
        %603 = vrot.lane.b32.xlu0 %v382, 96
        %v604 = vpop.permute.xlu0 %603
        %605 = vrot.lane.b32.xlu0 %v383, 96
        %v606 = vpop.permute.xlu0 %605
        %607 = vrot.lane.b32.xlu0 %v384, 96
        %v608 = vpop.permute.xlu0 %607
        %609 = vrot.lane.b32.xlu0 %v385, 96
        %v610 = vpop.permute.xlu0 %609
        %611 = vrot.lane.b32.xlu0 %v386, 96
        %v612 = vpop.permute.xlu0 %611
        %613 = vrot.lane.b32.xlu0 %v387, 96
        %v614 = vpop.permute.xlu0 %613
        %615 = vrot.lane.b32.xlu0 %v388, 96
        %v616 = vpop.permute.xlu0 %615
        %617 = vrot.lane.b32.xlu0 %v389, 96
        %v618 = vpop.permute.xlu0 %617
        %vm627 = vcmask 261120
        %v628 = vsel %vm627, %v324, %v444
        %v629 = vsel %vm627, %v325, %v446
        %v630 = vsel %vm627, %v326, %v448
        %v631 = vsel %vm627, %v327, %v450
        %v632 = vsel %vm627, %v328, %v452
        %v633 = vsel %vm627, %v329, %v454
        %v634 = vsel %vm627, %v330, %v456
        %v635 = vsel %vm627, %v331, %v458
        %vm636 = vcmask 523264
        %v637 = vsel %vm636, %v628, %v476
        %v638 = vsel %vm636, %v629, %v478
        %v639 = vsel %vm636, %v630, %v480
        %v640 = vsel %vm636, %v631, %v482
        %v641 = vsel %vm636, %v632, %v484
        %v642 = vsel %vm636, %v633, %v486
        %v643 = vsel %vm636, %v634, %v488
        %v644 = vsel %vm636, %v635, %v490
        %vm645 = vcmask 785408
        %v646 = vsel %vm645, %v637, %v508
        %v647 = vsel %vm645, %v638, %v510
        %v648 = vsel %vm645, %v639, %v512
        %v649 = vsel %vm645, %v640, %v514
        %v650 = vsel %vm645, %v641, %v516
        %v651 = vsel %vm645, %v642, %v518
        %v652 = vsel %vm645, %v643, %v520
        %v653 = vsel %vm645, %v644, %v522
        %v654 = vsel %vm627, %v357, %v540
        %v655 = vsel %vm627, %v358, %v542
        %v656 = vsel %vm627, %v359, %v544
        %v657 = vsel %vm627, %v360, %v546
        %v658 = vsel %vm627, %v361, %v548
        %v659 = vsel %vm627, %v362, %v550
        %v660 = vsel %vm627, %v363, %v552
        %v661 = vsel %vm627, %v364, %v554
        %v662 = vsel %vm636, %v654, %v572
        %v663 = vsel %vm636, %v655, %v574
        %v664 = vsel %vm636, %v656, %v576
        %v665 = vsel %vm636, %v657, %v578
        %v666 = vsel %vm636, %v658, %v580
        %v667 = vsel %vm636, %v659, %v582
        %v668 = vsel %vm636, %v660, %v584
        %v669 = vsel %vm636, %v661, %v586
        %v670 = vsel %vm645, %v662, %v604
        %v671 = vsel %vm645, %v663, %v606
        %v672 = vsel %vm645, %v664, %v608
        %v673 = vsel %vm645, %v665, %v610
        %v674 = vsel %vm645, %v666, %v612
        %v675 = vsel %vm645, %v667, %v614
        %v676 = vsel %vm645, %v668, %v616
        %v677 = vsel %vm645, %v669, %v618
        %v679 = vperm.slane %v434, 0
        %v682 = vsel %vm627, %v390, 0
        %v685 = vsel %vm627, %v391, 0
        %v688 = vsel %vm627, %v392, 0
        %v691 = vsel %vm627, %v393, 0
        %v694 = vsel %vm627, %v394, 0
        %v697 = vsel %vm627, %v395, 0
        %v700 = vsel %vm627, %v396, 0
        %v703 = vsel %vm627, %v397, 0
        %705 = vmatpush.msra.mxu0 %v413
        %706 = vmatpush.msra.mxu0 %v412
        %707 = vmatpush.msra.mxu0 %v411
        %708 = vmatpush.msra.mxu0 %v410
        %709 = vmatpush.msra.mxu0 %v409
        %710 = vmatpush.msra.mxu0 %v408
        %711 = vmatpush.msra.mxu0 %v407
        %712 = vmatpush.msra.mxu0 %v406
        %713 = vmatpush.msra.mxu0 %v405
        %714 = vmatpush.msra.mxu0 %v404
        %715 = vmatpush.msra.mxu0 %v403
        %716 = vmatpush.msra.mxu0 %v402
        %717 = vmatpush.msra.mxu0 %v401
        %718 = vmatpush.msra.mxu0 %v400
        %719 = vmatpush.msra.mxu0 %v399
        %720 = vmatpush.msra.mxu0 %v398
        %721 = vmatmul.f32.gmra.mxu0 %v646
        %v722 = vpop.f32.mrf.mxu0
        %v723 = vadd.f32 %v679, %v722
        %724 = vmatmul.f32.gmra.mxu0 %v647
        %v725 = vpop.f32.mrf.mxu0
        %v726 = vadd.f32 %v679, %v725
        %727 = vmatmul.f32.gmra.mxu0 %v648
        %v728 = vpop.f32.mrf.mxu0
        %v729 = vadd.f32 %v679, %v728
        %730 = vmatmul.f32.gmra.mxu0 %v649
        %v731 = vpop.f32.mrf.mxu0
        %v732 = vadd.f32 %v679, %v731
        %733 = vmatmul.f32.gmra.mxu0 %v650
        %v734 = vpop.f32.mrf.mxu0
        %v735 = vadd.f32 %v679, %v734
        %736 = vmatmul.f32.gmra.mxu0 %v651
        %v737 = vpop.f32.mrf.mxu0
        %v738 = vadd.f32 %v679, %v737
        %739 = vmatmul.f32.gmra.mxu0 %v652
        %v740 = vpop.f32.mrf.mxu0
        %v741 = vadd.f32 %v679, %v740
        %742 = vmatmul.f32.gmra.mxu0 %v653
        %v743 = vpop.f32.mrf.mxu0
        %v744 = vadd.f32 %v679, %v743
        %745 = vdwg.mxu0
        %746 = vmatpush.msra.mxu0 %v429
        %747 = vmatpush.msra.mxu0 %v428
        %748 = vmatpush.msra.mxu0 %v427
        %749 = vmatpush.msra.mxu0 %v426
        %750 = vmatpush.msra.mxu0 %v425
        %751 = vmatpush.msra.mxu0 %v424
        %752 = vmatpush.msra.mxu0 %v423
        %753 = vmatpush.msra.mxu0 %v422
        %754 = vmatpush.msra.mxu0 %v421
        %755 = vmatpush.msra.mxu0 %v420
        %756 = vmatpush.msra.mxu0 %v419
        %757 = vmatpush.msra.mxu0 %v418
        %758 = vmatpush.msra.mxu0 %v417
        %759 = vmatpush.msra.mxu0 %v416
        %760 = vmatpush.msra.mxu0 %v415
        %761 = vmatpush.msra.mxu0 %v414
        %762 = vmatmul.f32.gmra.mxu0 %v670
        %v763 = vpop.f32.mrf.mxu0
        %v764 = vadd.f32 %v723, %v763
        %765 = vmatmul.f32.gmra.mxu0 %v671
        %v766 = vpop.f32.mrf.mxu0
        %v767 = vadd.f32 %v726, %v766
        %768 = vmatmul.f32.gmra.mxu0 %v672
        %v769 = vpop.f32.mrf.mxu0
        %v770 = vadd.f32 %v729, %v769
        %771 = vmatmul.f32.gmra.mxu0 %v673
        %v772 = vpop.f32.mrf.mxu0
        %v773 = vadd.f32 %v732, %v772
        %774 = vmatmul.f32.gmra.mxu0 %v674
        %v775 = vpop.f32.mrf.mxu0
        %v776 = vadd.f32 %v735, %v775
        %777 = vmatmul.f32.gmra.mxu0 %v675
        %v778 = vpop.f32.mrf.mxu0
        %v779 = vadd.f32 %v738, %v778
        %780 = vmatmul.f32.gmra.mxu0 %v676
        %v781 = vpop.f32.mrf.mxu0
        %v782 = vadd.f32 %v741, %v781
        %783 = vmatmul.f32.gmra.mxu0 %v677
        %v784 = vpop.f32.mrf.mxu0
        %v785 = vadd.f32 %v744, %v784
        %786 = vdwg.mxu0
        %787 = vmatpush.msra.mxu0 0.0
        %788 = vmatpush.msra.mxu0 0.0
        %789 = vmatpush.msra.mxu0 0.0
        %790 = vmatpush.msra.mxu0 0.0
        %791 = vmatpush.msra.mxu0 0.0
        %792 = vmatpush.msra.mxu0 0.0
        %793 = vmatpush.msra.mxu0 0.0
        %794 = vmatpush.msra.mxu0 0.0
        %795 = vmatpush.msra.mxu0 0.0
        %796 = vmatpush.msra.mxu0 0.0
        %797 = vmatpush.msra.mxu0 0.0
        %798 = vmatpush.msra.mxu0 0.0
        %799 = vmatpush.msra.mxu0 %v433
        %800 = vmatpush.msra.mxu0 %v432
        %801 = vmatpush.msra.mxu0 %v431
        %802 = vmatpush.msra.mxu0 %v430
        %803 = vmatmul.f32.gmra.mxu0 %v682
        %v804 = vpop.f32.mrf.mxu0
        %v805 = vadd.f32 %v764, %v804
        %806 = vmatmul.f32.gmra.mxu0 %v685
        %v807 = vpop.f32.mrf.mxu0
        %v808 = vadd.f32 %v767, %v807
        %809 = vmatmul.f32.gmra.mxu0 %v688
        %v810 = vpop.f32.mrf.mxu0
        %v811 = vadd.f32 %v770, %v810
        %812 = vmatmul.f32.gmra.mxu0 %v691
        %v813 = vpop.f32.mrf.mxu0
        %v814 = vadd.f32 %v773, %v813
        %815 = vmatmul.f32.gmra.mxu0 %v694
        %v816 = vpop.f32.mrf.mxu0
        %v817 = vadd.f32 %v776, %v816
        %818 = vmatmul.f32.gmra.mxu0 %v697
        %v819 = vpop.f32.mrf.mxu0
        %v820 = vadd.f32 %v779, %v819
        %821 = vmatmul.f32.gmra.mxu0 %v700
        %v822 = vpop.f32.mrf.mxu0
        %v823 = vadd.f32 %v782, %v822
        %824 = vmatmul.f32.gmra.mxu0 %v703
        %v825 = vpop.f32.mrf.mxu0
        %v826 = vadd.f32 %v785, %v825
        %827 = vdwg.mxu0
        %v828 = vmax.f32 %v805, 0.0
        %v829 = vmax.f32 %v808, 0.0
        %v830 = vmax.f32 %v811, 0.0
        %v831 = vmax.f32 %v814, 0.0
        %v832 = vmax.f32 %v817, 0.0
        %v833 = vmax.f32 %v820, 0.0
        %v834 = vmax.f32 %v823, 0.0
        %v835 = vmax.f32 %v826, 0.0
        %vm836 = vcmask 130048
        %837 = vst.msk [vmem:[#allocation2] sm:$0xff] %vm836, 0.0
        %vm838 = vcmask 123904
        %839 = vst.msk [vmem:[#allocation2 + $0x8] sm:$0x3] %vm838, 0.0
        %s840 = scalar_lea.vmem [#allocation2], 144
        %841 = vst.msk [vmem:[%s840] sm:$0xff] %vm836, 0.0
        %842 = vst.msk [vmem:[%s840 + $0x8] sm:$0x3] %vm838, 0.0
        %vm843 = vcmask 122880
        %844 = vst.msk [vmem:[#allocation2] sm:$0x1] %vm843, 0.0
        %845 = vst.msk [vmem:[#allocation2 + $0x10] sm:$0x1] %vm843, 0.0
        %846 = vst.msk [vmem:[#allocation2 + $0x20] sm:$0x1] %vm843, 0.0
        %847 = vst.msk [vmem:[#allocation2 + $0x30] sm:$0x1] %vm843, 0.0
        %848 = vst.msk [vmem:[#allocation2 + $0x40] sm:$0x1] %vm843, 0.0
        %849 = vst.msk [vmem:[#allocation2 + $0x50] sm:$0x1] %vm843, 0.0
        %850 = vst.msk [vmem:[#allocation2 + $0x60] sm:$0x1] %vm843, 0.0
        %851 = vst.msk [vmem:[#allocation2 + $0x70] sm:$0x1] %vm843, 0.0
        %852 = vst.msk [vmem:[#allocation2 + $0x80] sm:$0x1] %vm843, 0.0
        %853 = vst.msk [vmem:[#allocation2 + $0x90] sm:$0x1] %vm843, 0.0
        %854 = vst.msk [vmem:[#allocation2 + $0x9] sm:$0x1] %vm843, 0.0
        %855 = vst.msk [vmem:[#allocation2 + $0x19] sm:$0x1] %vm843, 0.0
        %856 = vst.msk [vmem:[#allocation2 + $0x29] sm:$0x1] %vm843, 0.0
        %857 = vst.msk [vmem:[#allocation2 + $0x39] sm:$0x1] %vm843, 0.0
        %858 = vst.msk [vmem:[#allocation2 + $0x49] sm:$0x1] %vm843, 0.0
        %859 = vst.msk [vmem:[#allocation2 + $0x59] sm:$0x1] %vm843, 0.0
        %860 = vst.msk [vmem:[#allocation2 + $0x69] sm:$0x1] %vm843, 0.0
        %861 = vst.msk [vmem:[#allocation2 + $0x79] sm:$0x1] %vm843, 0.0
        %862 = vst.msk [vmem:[#allocation2 + $0x89] sm:$0x1] %vm843, 0.0
        %863 = vst.msk [vmem:[#allocation2 + $0x99] sm:$0x1] %vm843, 0.0
        %s864 = scalar_lea.vmem [#allocation2], 16
        %865 = vst.msk [vmem:[%s864 + $0x1] sm:$0xff] %vm836, %v828
        %866 = vst.msk [vmem:[%s864 + $0x11] sm:$0xff] %vm836, %v829
        %867 = vst.msk [vmem:[%s864 + $0x21] sm:$0xff] %vm836, %v830
        %868 = vst.msk [vmem:[%s864 + $0x31] sm:$0xff] %vm836, %v831
        %869 = vst.msk [vmem:[%s864 + $0x41] sm:$0xff] %vm836, %v832
        %870 = vst.msk [vmem:[%s864 + $0x51] sm:$0xff] %vm836, %v833
        %871 = vst.msk [vmem:[%s864 + $0x61] sm:$0xff] %vm836, %v834
        %872 = vst.msk [vmem:[%s864 + $0x71] sm:$0xff] %vm836, %v835
        %v873 = vld [vmem:[%s323] sm:$0xff]
        %v874 = vld [vmem:[%s323 + $0x10] sm:$0xff]
        %v875 = vld [vmem:[%s323 + $0x20] sm:$0xff]
        %v876 = vld [vmem:[%s323 + $0x30] sm:$0xff]
        %v877 = vld [vmem:[%s323 + $0x40] sm:$0xff]
        %v878 = vld [vmem:[%s323 + $0x50] sm:$0xff]
        %v879 = vld [vmem:[%s323 + $0x60] sm:$0xff]
        %v880 = vld [vmem:[%s323 + $0x70] sm:$0xff]
        %v881 = vld [vmem:[#allocation2] sm:$0xff]
        %v882 = vld [vmem:[#allocation2 + $0x10] sm:$0xff]
        %v883 = vld [vmem:[#allocation2 + $0x20] sm:$0xff]
        %v884 = vld [vmem:[#allocation2 + $0x30] sm:$0xff]
        %v885 = vld [vmem:[#allocation2 + $0x40] sm:$0xff]
        %v886 = vld [vmem:[#allocation2 + $0x50] sm:$0xff]
        %v887 = vld [vmem:[#allocation2 + $0x60] sm:$0xff]
        %v888 = vld [vmem:[#allocation2 + $0x70] sm:$0xff]
        %v889 = vld [vmem:[%s323 + $0x1] sm:$0xff]
        %v890 = vld [vmem:[%s323 + $0x11] sm:$0xff]
        %v891 = vld [vmem:[%s323 + $0x21] sm:$0xff]
        %v892 = vld [vmem:[%s323 + $0x31] sm:$0xff]
        %v893 = vld [vmem:[%s323 + $0x41] sm:$0xff]
        %v894 = vld [vmem:[%s323 + $0x51] sm:$0xff]
        %v895 = vld [vmem:[%s323 + $0x61] sm:$0xff]
        %v896 = vld [vmem:[%s323 + $0x71] sm:$0xff]
        %v897 = vld [vmem:[#allocation2 + $0x1] sm:$0xff]
        %v898 = vld [vmem:[#allocation2 + $0x11] sm:$0xff]
        %v899 = vld [vmem:[#allocation2 + $0x21] sm:$0xff]
        %v900 = vld [vmem:[#allocation2 + $0x31] sm:$0xff]
        %v901 = vld [vmem:[#allocation2 + $0x41] sm:$0xff]
        %v902 = vld [vmem:[#allocation2 + $0x51] sm:$0xff]
        %v903 = vld [vmem:[#allocation2 + $0x61] sm:$0xff]
        %v904 = vld [vmem:[#allocation2 + $0x71] sm:$0xff]
        %v905 = vld [vmem:[%s323 + $0x2] sm:$0xff]
        %v906 = vld [vmem:[%s323 + $0x12] sm:$0xff]
        %v907 = vld [vmem:[%s323 + $0x22] sm:$0xff]
        %v908 = vld [vmem:[%s323 + $0x32] sm:$0xff]
        %v909 = vld [vmem:[%s323 + $0x42] sm:$0xff]
        %v910 = vld [vmem:[%s323 + $0x52] sm:$0xff]
        %v911 = vld [vmem:[%s323 + $0x62] sm:$0xff]
        %v912 = vld [vmem:[%s323 + $0x72] sm:$0xff]
        %v913 = vld [vmem:[#allocation2 + $0x2] sm:$0xff]
        %v914 = vld [vmem:[#allocation2 + $0x12] sm:$0xff]
        %v915 = vld [vmem:[#allocation2 + $0x22] sm:$0xff]
        %v916 = vld [vmem:[#allocation2 + $0x32] sm:$0xff]
        %v917 = vld [vmem:[#allocation2 + $0x42] sm:$0xff]
        %v918 = vld [vmem:[#allocation2 + $0x52] sm:$0xff]
        %v919 = vld [vmem:[#allocation2 + $0x62] sm:$0xff]
        %v920 = vld [vmem:[#allocation2 + $0x72] sm:$0xff]
        %s921 = scalar_lea.vmem %s323, 16
        %v922 = vld [vmem:[%s921] sm:$0xff]
        %v923 = vld [vmem:[%s921 + $0x10] sm:$0xff]
        %v924 = vld [vmem:[%s921 + $0x20] sm:$0xff]
        %v925 = vld [vmem:[%s921 + $0x30] sm:$0xff]
        %v926 = vld [vmem:[%s921 + $0x40] sm:$0xff]
        %v927 = vld [vmem:[%s921 + $0x50] sm:$0xff]
        %v928 = vld [vmem:[%s921 + $0x60] sm:$0xff]
        %v929 = vld [vmem:[%s921 + $0x70] sm:$0xff]
        %v930 = vld [vmem:[%s864] sm:$0xff]
        %v931 = vld [vmem:[%s864 + $0x10] sm:$0xff]
        %v932 = vld [vmem:[%s864 + $0x20] sm:$0xff]
        %v933 = vld [vmem:[%s864 + $0x30] sm:$0xff]
        %v934 = vld [vmem:[%s864 + $0x40] sm:$0xff]
        %v935 = vld [vmem:[%s864 + $0x50] sm:$0xff]
        %v936 = vld [vmem:[%s864 + $0x60] sm:$0xff]
        %v937 = vld [vmem:[%s864 + $0x70] sm:$0xff]
        %v938 = vld [vmem:[%s921 + $0x1] sm:$0xff]
        %v939 = vld [vmem:[%s921 + $0x11] sm:$0xff]
        %v940 = vld [vmem:[%s921 + $0x21] sm:$0xff]
        %v941 = vld [vmem:[%s921 + $0x31] sm:$0xff]
        %v942 = vld [vmem:[%s921 + $0x41] sm:$0xff]
        %v943 = vld [vmem:[%s921 + $0x51] sm:$0xff]
        %v944 = vld [vmem:[%s921 + $0x61] sm:$0xff]
        %v945 = vld [vmem:[%s921 + $0x71] sm:$0xff]
        %v946 = vld [vmem:[%s864 + $0x1] sm:$0xff]
        %v947 = vld [vmem:[%s864 + $0x11] sm:$0xff]
        %v948 = vld [vmem:[%s864 + $0x21] sm:$0xff]
        %v949 = vld [vmem:[%s864 + $0x31] sm:$0xff]
        %v950 = vld [vmem:[%s864 + $0x41] sm:$0xff]
        %v951 = vld [vmem:[%s864 + $0x51] sm:$0xff]
        %v952 = vld [vmem:[%s864 + $0x61] sm:$0xff]
        %v953 = vld [vmem:[%s864 + $0x71] sm:$0xff]
        %v954 = vld [vmem:[%s921 + $0x2] sm:$0xff]
        %v955 = vld [vmem:[%s921 + $0x12] sm:$0xff]
        %v956 = vld [vmem:[%s921 + $0x22] sm:$0xff]
        %v957 = vld [vmem:[%s921 + $0x32] sm:$0xff]
        %v958 = vld [vmem:[%s921 + $0x42] sm:$0xff]
        %v959 = vld [vmem:[%s921 + $0x52] sm:$0xff]
        %v960 = vld [vmem:[%s921 + $0x62] sm:$0xff]
        %v961 = vld [vmem:[%s921 + $0x72] sm:$0xff]
        %v962 = vld [vmem:[%s864 + $0x2] sm:$0xff]
        %v963 = vld [vmem:[%s864 + $0x12] sm:$0xff]
        %v964 = vld [vmem:[%s864 + $0x22] sm:$0xff]
        %v965 = vld [vmem:[%s864 + $0x32] sm:$0xff]
        %v966 = vld [vmem:[%s864 + $0x42] sm:$0xff]
        %v967 = vld [vmem:[%s864 + $0x52] sm:$0xff]
        %v968 = vld [vmem:[%s864 + $0x62] sm:$0xff]
        %v969 = vld [vmem:[%s864 + $0x72] sm:$0xff]
        %s970 = scalar_lea.vmem %s323, 32
        %v971 = vld [vmem:[%s970] sm:$0xff]
        %v972 = vld [vmem:[%s970 + $0x10] sm:$0xff]
        %v973 = vld [vmem:[%s970 + $0x20] sm:$0xff]
        %v974 = vld [vmem:[%s970 + $0x30] sm:$0xff]
        %v975 = vld [vmem:[%s970 + $0x40] sm:$0xff]
        %v976 = vld [vmem:[%s970 + $0x50] sm:$0xff]
        %v977 = vld [vmem:[%s970 + $0x60] sm:$0xff]
        %v978 = vld [vmem:[%s970 + $0x70] sm:$0xff]
        %s979 = scalar_lea.vmem [#allocation2], 32
        %v980 = vld [vmem:[%s979] sm:$0xff]
        %v981 = vld [vmem:[%s979 + $0x10] sm:$0xff]
        %v982 = vld [vmem:[%s979 + $0x20] sm:$0xff]
        %v983 = vld [vmem:[%s979 + $0x30] sm:$0xff]
        %v984 = vld [vmem:[%s979 + $0x40] sm:$0xff]
        %v985 = vld [vmem:[%s979 + $0x50] sm:$0xff]
        %v986 = vld [vmem:[%s979 + $0x60] sm:$0xff]
        %v987 = vld [vmem:[%s979 + $0x70] sm:$0xff]
        %v988 = vld [vmem:[%s970 + $0x1] sm:$0xff]
        %v989 = vld [vmem:[%s970 + $0x11] sm:$0xff]
        %v990 = vld [vmem:[%s970 + $0x21] sm:$0xff]
        %v991 = vld [vmem:[%s970 + $0x31] sm:$0xff]
        %v992 = vld [vmem:[%s970 + $0x41] sm:$0xff]
        %v993 = vld [vmem:[%s970 + $0x51] sm:$0xff]
        %v994 = vld [vmem:[%s970 + $0x61] sm:$0xff]
        %v995 = vld [vmem:[%s970 + $0x71] sm:$0xff]
        %v996 = vld [vmem:[%s979 + $0x1] sm:$0xff]
        %v997 = vld [vmem:[%s979 + $0x11] sm:$0xff]
        %v998 = vld [vmem:[%s979 + $0x21] sm:$0xff]
        %v999 = vld [vmem:[%s979 + $0x31] sm:$0xff]
        %v1000 = vld [vmem:[%s979 + $0x41] sm:$0xff]
        %v1001 = vld [vmem:[%s979 + $0x51] sm:$0xff]
        %v1002 = vld [vmem:[%s979 + $0x61] sm:$0xff]
        %v1003 = vld [vmem:[%s979 + $0x71] sm:$0xff]
        %v1004 = vld [vmem:[%s970 + $0x2] sm:$0xff]
        %v1005 = vld [vmem:[%s970 + $0x12] sm:$0xff]
        %v1006 = vld [vmem:[%s970 + $0x22] sm:$0xff]
        %v1007 = vld [vmem:[%s970 + $0x32] sm:$0xff]
        %v1008 = vld [vmem:[%s970 + $0x42] sm:$0xff]
        %v1009 = vld [vmem:[%s970 + $0x52] sm:$0xff]
        %v1010 = vld [vmem:[%s970 + $0x62] sm:$0xff]
        %v1011 = vld [vmem:[%s970 + $0x72] sm:$0xff]
        %v1012 = vld [vmem:[%s979 + $0x2] sm:$0xff]
        %v1013 = vld [vmem:[%s979 + $0x12] sm:$0xff]
        %v1014 = vld [vmem:[%s979 + $0x22] sm:$0xff]
        %v1015 = vld [vmem:[%s979 + $0x32] sm:$0xff]
        %v1016 = vld [vmem:[%s979 + $0x42] sm:$0xff]
        %v1017 = vld [vmem:[%s979 + $0x52] sm:$0xff]
        %v1018 = vld [vmem:[%s979 + $0x62] sm:$0xff]
        %v1019 = vld [vmem:[%s979 + $0x72] sm:$0xff]
        %v1020 = vld [vmem:[%s4] sm:$0xff]
        %v1021 = vld [vmem:[%s4 + $0x8] sm:$0xff]
        %v1022 = vld [vmem:[%s4 + $0x10] sm:$0xff]
        %v1023 = vld [vmem:[%s4 + $0x18] sm:$0xff]
        %v1024 = vld [vmem:[%s4 + $0x20] sm:$0xff]
        %v1025 = vld [vmem:[%s4 + $0x28] sm:$0xff]
        %v1026 = vld [vmem:[%s4 + $0x30] sm:$0xff]
        %v1027 = vld [vmem:[%s4 + $0x38] sm:$0xff]
        %v1028 = vld [vmem:[%s4 + $0x40] sm:$0xff]
        %v1029 = vld [vmem:[%s4 + $0x48] sm:$0xff]
        %v1030 = vld [vmem:[%s4 + $0x50] sm:$0xff]
        %v1031 = vld [vmem:[%s4 + $0x58] sm:$0xff]
        %v1032 = vld [vmem:[%s4 + $0x60] sm:$0xff]
        %v1033 = vld [vmem:[%s4 + $0x68] sm:$0xff]
        %v1034 = vld [vmem:[%s4 + $0x70] sm:$0xff]
        %v1035 = vld [vmem:[%s4 + $0x78] sm:$0xff]
        %v1036 = vld [vmem:[%s4 + $0x80] sm:$0xff]
        %v1037 = vld [vmem:[%s4 + $0x88] sm:$0xff]
        %v1038 = vld [vmem:[%s4 + $0x90] sm:$0xff]
        %v1039 = vld [vmem:[%s4 + $0x98] sm:$0xff]
        %v1040 = vld [vmem:[%s4 + $0xa0] sm:$0xff]
        %v1041 = vld [vmem:[%s4 + $0xa8] sm:$0xff]
        %v1042 = vld [vmem:[%s4 + $0xb0] sm:$0xff]
        %v1043 = vld [vmem:[%s4 + $0xb8] sm:$0xff]
        %v1044 = vld [vmem:[%s4 + $0xc0] sm:$0xff]
        %v1045 = vld [vmem:[%s4 + $0xc8] sm:$0xff]
        %v1046 = vld [vmem:[%s4 + $0xd0] sm:$0xff]
        %v1047 = vld [vmem:[%s4 + $0xd8] sm:$0xff]
        %v1048 = vld [vmem:[%s4 + $0xe0] sm:$0xff]
        %v1049 = vld [vmem:[%s4 + $0xe8] sm:$0xff]
        %v1050 = vld [vmem:[%s4 + $0xf0] sm:$0xff]
        %v1051 = vld [vmem:[%s4 + $0xf8] sm:$0xff]
        %v1052 = vld [vmem:[%s4 + $0x100] sm:$0xff]
        %v1053 = vld [vmem:[%s4 + $0x108] sm:$0xff]
        %v1054 = vld [vmem:[%s4 + $0x110] sm:$0xff]
        %v1055 = vld [vmem:[%s4 + $0x118] sm:$0xff]
        %v1056 = vld [vmem:[%s5] sm:$0x1]
        %1065 = vrot.lane.b32.xlu0 %v881, 16
        %v1066 = vpop.permute.xlu0 %1065
        %1067 = vrot.lane.b32.xlu0 %v882, 16
        %v1068 = vpop.permute.xlu0 %1067
        %1069 = vrot.lane.b32.xlu0 %v883, 16
        %v1070 = vpop.permute.xlu0 %1069
        %1071 = vrot.lane.b32.xlu0 %v884, 16
        %v1072 = vpop.permute.xlu0 %1071
        %1073 = vrot.lane.b32.xlu0 %v885, 16
        %v1074 = vpop.permute.xlu0 %1073
        %1075 = vrot.lane.b32.xlu0 %v886, 16
        %v1076 = vpop.permute.xlu0 %1075
        %1077 = vrot.lane.b32.xlu0 %v887, 16
        %v1078 = vpop.permute.xlu0 %1077
        %1079 = vrot.lane.b32.xlu0 %v888, 16
        %v1080 = vpop.permute.xlu0 %1079
        %1097 = vrot.lane.b32.xlu0 %v889, 32
        %v1098 = vpop.permute.xlu0 %1097
        %1099 = vrot.lane.b32.xlu0 %v890, 32
        %v1100 = vpop.permute.xlu0 %1099
        %1101 = vrot.lane.b32.xlu0 %v891, 32
        %v1102 = vpop.permute.xlu0 %1101
        %1103 = vrot.lane.b32.xlu0 %v892, 32
        %v1104 = vpop.permute.xlu0 %1103
        %1105 = vrot.lane.b32.xlu0 %v893, 32
        %v1106 = vpop.permute.xlu0 %1105
        %1107 = vrot.lane.b32.xlu0 %v894, 32
        %v1108 = vpop.permute.xlu0 %1107
        %1109 = vrot.lane.b32.xlu0 %v895, 32
        %v1110 = vpop.permute.xlu0 %1109
        %1111 = vrot.lane.b32.xlu0 %v896, 32
        %v1112 = vpop.permute.xlu0 %1111
        %1129 = vrot.lane.b32.xlu0 %v897, 48
        %v1130 = vpop.permute.xlu0 %1129
        %1131 = vrot.lane.b32.xlu0 %v898, 48
        %v1132 = vpop.permute.xlu0 %1131
        %1133 = vrot.lane.b32.xlu0 %v899, 48
        %v1134 = vpop.permute.xlu0 %1133
        %1135 = vrot.lane.b32.xlu0 %v900, 48
        %v1136 = vpop.permute.xlu0 %1135
        %1137 = vrot.lane.b32.xlu0 %v901, 48
        %v1138 = vpop.permute.xlu0 %1137
        %1139 = vrot.lane.b32.xlu0 %v902, 48
        %v1140 = vpop.permute.xlu0 %1139
        %1141 = vrot.lane.b32.xlu0 %v903, 48
        %v1142 = vpop.permute.xlu0 %1141
        %1143 = vrot.lane.b32.xlu0 %v904, 48
        %v1144 = vpop.permute.xlu0 %1143
        %1161 = vrot.lane.b32.xlu0 %v905, 64
        %v1162 = vpop.permute.xlu0 %1161
        %1163 = vrot.lane.b32.xlu0 %v906, 64
        %v1164 = vpop.permute.xlu0 %1163
        %1165 = vrot.lane.b32.xlu0 %v907, 64
        %v1166 = vpop.permute.xlu0 %1165
        %1167 = vrot.lane.b32.xlu0 %v908, 64
        %v1168 = vpop.permute.xlu0 %1167
        %1169 = vrot.lane.b32.xlu0 %v909, 64
        %v1170 = vpop.permute.xlu0 %1169
        %1171 = vrot.lane.b32.xlu0 %v910, 64
        %v1172 = vpop.permute.xlu0 %1171
        %1173 = vrot.lane.b32.xlu0 %v911, 64
        %v1174 = vpop.permute.xlu0 %1173
        %1175 = vrot.lane.b32.xlu0 %v912, 64
        %v1176 = vpop.permute.xlu0 %1175
        %1193 = vrot.lane.b32.xlu0 %v913, 80
        %v1194 = vpop.permute.xlu0 %1193
        %1195 = vrot.lane.b32.xlu0 %v914, 80
        %v1196 = vpop.permute.xlu0 %1195
        %1197 = vrot.lane.b32.xlu0 %v915, 80
        %v1198 = vpop.permute.xlu0 %1197
        %1199 = vrot.lane.b32.xlu0 %v916, 80
        %v1200 = vpop.permute.xlu0 %1199
        %1201 = vrot.lane.b32.xlu0 %v917, 80
        %v1202 = vpop.permute.xlu0 %1201
        %1203 = vrot.lane.b32.xlu0 %v918, 80
        %v1204 = vpop.permute.xlu0 %1203
        %1205 = vrot.lane.b32.xlu0 %v919, 80
        %v1206 = vpop.permute.xlu0 %1205
        %1207 = vrot.lane.b32.xlu0 %v920, 80
        %v1208 = vpop.permute.xlu0 %1207
        %1225 = vrot.lane.b32.xlu0 %v922, 96
        %v1226 = vpop.permute.xlu0 %1225
        %1227 = vrot.lane.b32.xlu0 %v923, 96
        %v1228 = vpop.permute.xlu0 %1227
        %1229 = vrot.lane.b32.xlu0 %v924, 96
        %v1230 = vpop.permute.xlu0 %1229
        %1231 = vrot.lane.b32.xlu0 %v925, 96
        %v1232 = vpop.permute.xlu0 %1231
        %1233 = vrot.lane.b32.xlu0 %v926, 96
        %v1234 = vpop.permute.xlu0 %1233
        %1235 = vrot.lane.b32.xlu0 %v927, 96
        %v1236 = vpop.permute.xlu0 %1235
        %1237 = vrot.lane.b32.xlu0 %v928, 96
        %v1238 = vpop.permute.xlu0 %1237
        %1239 = vrot.lane.b32.xlu0 %v929, 96
        %v1240 = vpop.permute.xlu0 %1239
        %1257 = vrot.lane.b32.xlu0 %v930, 112
        %v1258 = vpop.permute.xlu0 %1257
        %1259 = vrot.lane.b32.xlu0 %v931, 112
        %v1260 = vpop.permute.xlu0 %1259
        %1261 = vrot.lane.b32.xlu0 %v932, 112
        %v1262 = vpop.permute.xlu0 %1261
        %1263 = vrot.lane.b32.xlu0 %v933, 112
        %v1264 = vpop.permute.xlu0 %1263
        %1265 = vrot.lane.b32.xlu0 %v934, 112
        %v1266 = vpop.permute.xlu0 %1265
        %1267 = vrot.lane.b32.xlu0 %v935, 112
        %v1268 = vpop.permute.xlu0 %1267
        %1269 = vrot.lane.b32.xlu0 %v936, 112
        %v1270 = vpop.permute.xlu0 %1269
        %1271 = vrot.lane.b32.xlu0 %v937, 112
        %v1272 = vpop.permute.xlu0 %1271
        %1289 = vrot.lane.b32.xlu0 %v946, 16
        %v1290 = vpop.permute.xlu0 %1289
        %1291 = vrot.lane.b32.xlu0 %v947, 16
        %v1292 = vpop.permute.xlu0 %1291
        %1293 = vrot.lane.b32.xlu0 %v948, 16
        %v1294 = vpop.permute.xlu0 %1293
        %1295 = vrot.lane.b32.xlu0 %v949, 16
        %v1296 = vpop.permute.xlu0 %1295
        %1297 = vrot.lane.b32.xlu0 %v950, 16
        %v1298 = vpop.permute.xlu0 %1297
        %1299 = vrot.lane.b32.xlu0 %v951, 16
        %v1300 = vpop.permute.xlu0 %1299
        %1301 = vrot.lane.b32.xlu0 %v952, 16
        %v1302 = vpop.permute.xlu0 %1301
        %1303 = vrot.lane.b32.xlu0 %v953, 16
        %v1304 = vpop.permute.xlu0 %1303
        %1321 = vrot.lane.b32.xlu0 %v954, 32
        %v1322 = vpop.permute.xlu0 %1321
        %1323 = vrot.lane.b32.xlu0 %v955, 32
        %v1324 = vpop.permute.xlu0 %1323
        %1325 = vrot.lane.b32.xlu0 %v956, 32
        %v1326 = vpop.permute.xlu0 %1325
        %1327 = vrot.lane.b32.xlu0 %v957, 32
        %v1328 = vpop.permute.xlu0 %1327
        %1329 = vrot.lane.b32.xlu0 %v958, 32
        %v1330 = vpop.permute.xlu0 %1329
        %1331 = vrot.lane.b32.xlu0 %v959, 32
        %v1332 = vpop.permute.xlu0 %1331
        %1333 = vrot.lane.b32.xlu0 %v960, 32
        %v1334 = vpop.permute.xlu0 %1333
        %1335 = vrot.lane.b32.xlu0 %v961, 32
        %v1336 = vpop.permute.xlu0 %1335
        %1353 = vrot.lane.b32.xlu0 %v962, 48
        %v1354 = vpop.permute.xlu0 %1353
        %1355 = vrot.lane.b32.xlu0 %v963, 48
        %v1356 = vpop.permute.xlu0 %1355
        %1357 = vrot.lane.b32.xlu0 %v964, 48
        %v1358 = vpop.permute.xlu0 %1357
        %1359 = vrot.lane.b32.xlu0 %v965, 48
        %v1360 = vpop.permute.xlu0 %1359
        %1361 = vrot.lane.b32.xlu0 %v966, 48
        %v1362 = vpop.permute.xlu0 %1361
        %1363 = vrot.lane.b32.xlu0 %v967, 48
        %v1364 = vpop.permute.xlu0 %1363
        %1365 = vrot.lane.b32.xlu0 %v968, 48
        %v1366 = vpop.permute.xlu0 %1365
        %1367 = vrot.lane.b32.xlu0 %v969, 48
        %v1368 = vpop.permute.xlu0 %1367
        %1385 = vrot.lane.b32.xlu0 %v971, 64
        %v1386 = vpop.permute.xlu0 %1385
        %1387 = vrot.lane.b32.xlu0 %v972, 64
        %v1388 = vpop.permute.xlu0 %1387
        %1389 = vrot.lane.b32.xlu0 %v973, 64
        %v1390 = vpop.permute.xlu0 %1389
        %1391 = vrot.lane.b32.xlu0 %v974, 64
        %v1392 = vpop.permute.xlu0 %1391
        %1393 = vrot.lane.b32.xlu0 %v975, 64
        %v1394 = vpop.permute.xlu0 %1393
        %1395 = vrot.lane.b32.xlu0 %v976, 64
        %v1396 = vpop.permute.xlu0 %1395
        %1397 = vrot.lane.b32.xlu0 %v977, 64
        %v1398 = vpop.permute.xlu0 %1397
        %1399 = vrot.lane.b32.xlu0 %v978, 64
        %v1400 = vpop.permute.xlu0 %1399
        %1417 = vrot.lane.b32.xlu0 %v980, 80
        %v1418 = vpop.permute.xlu0 %1417
        %1419 = vrot.lane.b32.xlu0 %v981, 80
        %v1420 = vpop.permute.xlu0 %1419
        %1421 = vrot.lane.b32.xlu0 %v982, 80
        %v1422 = vpop.permute.xlu0 %1421
        %1423 = vrot.lane.b32.xlu0 %v983, 80
        %v1424 = vpop.permute.xlu0 %1423
        %1425 = vrot.lane.b32.xlu0 %v984, 80
        %v1426 = vpop.permute.xlu0 %1425
        %1427 = vrot.lane.b32.xlu0 %v985, 80
        %v1428 = vpop.permute.xlu0 %1427
        %1429 = vrot.lane.b32.xlu0 %v986, 80
        %v1430 = vpop.permute.xlu0 %1429
        %1431 = vrot.lane.b32.xlu0 %v987, 80
        %v1432 = vpop.permute.xlu0 %1431
        %1449 = vrot.lane.b32.xlu0 %v988, 96
        %v1450 = vpop.permute.xlu0 %1449
        %1451 = vrot.lane.b32.xlu0 %v989, 96
        %v1452 = vpop.permute.xlu0 %1451
        %1453 = vrot.lane.b32.xlu0 %v990, 96
        %v1454 = vpop.permute.xlu0 %1453
        %1455 = vrot.lane.b32.xlu0 %v991, 96
        %v1456 = vpop.permute.xlu0 %1455
        %1457 = vrot.lane.b32.xlu0 %v992, 96
        %v1458 = vpop.permute.xlu0 %1457
        %1459 = vrot.lane.b32.xlu0 %v993, 96
        %v1460 = vpop.permute.xlu0 %1459
        %1461 = vrot.lane.b32.xlu0 %v994, 96
        %v1462 = vpop.permute.xlu0 %1461
        %1463 = vrot.lane.b32.xlu0 %v995, 96
        %v1464 = vpop.permute.xlu0 %1463
        %1481 = vrot.lane.b32.xlu0 %v996, 112
        %v1482 = vpop.permute.xlu0 %1481
        %1483 = vrot.lane.b32.xlu0 %v997, 112
        %v1484 = vpop.permute.xlu0 %1483
        %1485 = vrot.lane.b32.xlu0 %v998, 112
        %v1486 = vpop.permute.xlu0 %1485
        %1487 = vrot.lane.b32.xlu0 %v999, 112
        %v1488 = vpop.permute.xlu0 %1487
        %1489 = vrot.lane.b32.xlu0 %v1000, 112
        %v1490 = vpop.permute.xlu0 %1489
        %1491 = vrot.lane.b32.xlu0 %v1001, 112
        %v1492 = vpop.permute.xlu0 %1491
        %1493 = vrot.lane.b32.xlu0 %v1002, 112
        %v1494 = vpop.permute.xlu0 %1493
        %1495 = vrot.lane.b32.xlu0 %v1003, 112
        %v1496 = vpop.permute.xlu0 %1495
        %v1505 = vsel %vm836, %v873, %v1066
        %v1506 = vsel %vm836, %v874, %v1068
        %v1507 = vsel %vm836, %v875, %v1070
        %v1508 = vsel %vm836, %v876, %v1072
        %v1509 = vsel %vm836, %v877, %v1074
        %v1510 = vsel %vm836, %v878, %v1076
        %v1511 = vsel %vm836, %v879, %v1078
        %v1512 = vsel %vm836, %v880, %v1080
        %v1513 = vsel %vm627, %v1505, %v1098
        %v1514 = vsel %vm627, %v1506, %v1100
        %v1515 = vsel %vm627, %v1507, %v1102
        %v1516 = vsel %vm627, %v1508, %v1104
        %v1517 = vsel %vm627, %v1509, %v1106
        %v1518 = vsel %vm627, %v1510, %v1108
        %v1519 = vsel %vm627, %v1511, %v1110
        %v1520 = vsel %vm627, %v1512, %v1112
        %vm1521 = vcmask 392192
        %v1522 = vsel %vm1521, %v1513, %v1130
        %v1523 = vsel %vm1521, %v1514, %v1132
        %v1524 = vsel %vm1521, %v1515, %v1134
        %v1525 = vsel %vm1521, %v1516, %v1136
        %v1526 = vsel %vm1521, %v1517, %v1138
        %v1527 = vsel %vm1521, %v1518, %v1140
        %v1528 = vsel %vm1521, %v1519, %v1142
        %v1529 = vsel %vm1521, %v1520, %v1144
        %v1530 = vsel %vm636, %v1522, %v1162
        %v1531 = vsel %vm636, %v1523, %v1164
        %v1532 = vsel %vm636, %v1524, %v1166
        %v1533 = vsel %vm636, %v1525, %v1168
        %v1534 = vsel %vm636, %v1526, %v1170
        %v1535 = vsel %vm636, %v1527, %v1172
        %v1536 = vsel %vm636, %v1528, %v1174
        %v1537 = vsel %vm636, %v1529, %v1176
        %vm1538 = vcmask 654336
        %v1539 = vsel %vm1538, %v1530, %v1194
        %v1540 = vsel %vm1538, %v1531, %v1196
        %v1541 = vsel %vm1538, %v1532, %v1198
        %v1542 = vsel %vm1538, %v1533, %v1200
        %v1543 = vsel %vm1538, %v1534, %v1202
        %v1544 = vsel %vm1538, %v1535, %v1204
        %v1545 = vsel %vm1538, %v1536, %v1206
        %v1546 = vsel %vm1538, %v1537, %v1208
        %v1547 = vsel %vm645, %v1539, %v1226
        %v1548 = vsel %vm645, %v1540, %v1228
        %v1549 = vsel %vm645, %v1541, %v1230
        %v1550 = vsel %vm645, %v1542, %v1232
        %v1551 = vsel %vm645, %v1543, %v1234
        %v1552 = vsel %vm645, %v1544, %v1236
        %v1553 = vsel %vm645, %v1545, %v1238
        %v1554 = vsel %vm645, %v1546, %v1240
        %vm1555 = vcmask 916480
        %v1556 = vsel %vm1555, %v1547, %v1258
        %v1557 = vsel %vm1555, %v1548, %v1260
        %v1558 = vsel %vm1555, %v1549, %v1262
        %v1559 = vsel %vm1555, %v1550, %v1264
        %v1560 = vsel %vm1555, %v1551, %v1266
        %v1561 = vsel %vm1555, %v1552, %v1268
        %v1562 = vsel %vm1555, %v1553, %v1270
        %v1563 = vsel %vm1555, %v1554, %v1272
        %v1564 = vsel %vm836, %v938, %v1290
        %v1565 = vsel %vm836, %v939, %v1292
        %v1566 = vsel %vm836, %v940, %v1294
        %v1567 = vsel %vm836, %v941, %v1296
        %v1568 = vsel %vm836, %v942, %v1298
        %v1569 = vsel %vm836, %v943, %v1300
        %v1570 = vsel %vm836, %v944, %v1302
        %v1571 = vsel %vm836, %v945, %v1304
        %v1572 = vsel %vm627, %v1564, %v1322
        %v1573 = vsel %vm627, %v1565, %v1324
        %v1574 = vsel %vm627, %v1566, %v1326
        %v1575 = vsel %vm627, %v1567, %v1328
        %v1576 = vsel %vm627, %v1568, %v1330
        %v1577 = vsel %vm627, %v1569, %v1332
        %v1578 = vsel %vm627, %v1570, %v1334
        %v1579 = vsel %vm627, %v1571, %v1336
        %v1580 = vsel %vm1521, %v1572, %v1354
        %v1581 = vsel %vm1521, %v1573, %v1356
        %v1582 = vsel %vm1521, %v1574, %v1358
        %v1583 = vsel %vm1521, %v1575, %v1360
        %v1584 = vsel %vm1521, %v1576, %v1362
        %v1585 = vsel %vm1521, %v1577, %v1364
        %v1586 = vsel %vm1521, %v1578, %v1366
        %v1587 = vsel %vm1521, %v1579, %v1368
        %v1588 = vsel %vm636, %v1580, %v1386
        %v1589 = vsel %vm636, %v1581, %v1388
        %v1590 = vsel %vm636, %v1582, %v1390
        %v1591 = vsel %vm636, %v1583, %v1392
        %v1592 = vsel %vm636, %v1584, %v1394
        %v1593 = vsel %vm636, %v1585, %v1396
        %v1594 = vsel %vm636, %v1586, %v1398
        %v1595 = vsel %vm636, %v1587, %v1400
        %v1596 = vsel %vm1538, %v1588, %v1418
        %v1597 = vsel %vm1538, %v1589, %v1420
        %v1598 = vsel %vm1538, %v1590, %v1422
        %v1599 = vsel %vm1538, %v1591, %v1424
        %v1600 = vsel %vm1538, %v1592, %v1426
        %v1601 = vsel %vm1538, %v1593, %v1428
        %v1602 = vsel %vm1538, %v1594, %v1430
        %v1603 = vsel %vm1538, %v1595, %v1432
        %v1604 = vsel %vm645, %v1596, %v1450
        %v1605 = vsel %vm645, %v1597, %v1452
        %v1606 = vsel %vm645, %v1598, %v1454
        %v1607 = vsel %vm645, %v1599, %v1456
        %v1608 = vsel %vm645, %v1600, %v1458
        %v1609 = vsel %vm645, %v1601, %v1460
        %v1610 = vsel %vm645, %v1602, %v1462
        %v1611 = vsel %vm645, %v1603, %v1464
        %v1612 = vsel %vm1555, %v1604, %v1482
        %v1613 = vsel %vm1555, %v1605, %v1484
        %v1614 = vsel %vm1555, %v1606, %v1486
        %v1615 = vsel %vm1555, %v1607, %v1488
        %v1616 = vsel %vm1555, %v1608, %v1490
        %v1617 = vsel %vm1555, %v1609, %v1492
        %v1618 = vsel %vm1555, %v1610, %v1494
        %v1619 = vsel %vm1555, %v1611, %v1496
        %1628 = vrot.lane.b32.xlu0 %v1012, 16
        %v1629 = vpop.permute.xlu0 %1628
        %1630 = vrot.lane.b32.xlu0 %v1013, 16
        %v1631 = vpop.permute.xlu0 %1630
        %1632 = vrot.lane.b32.xlu0 %v1014, 16
        %v1633 = vpop.permute.xlu0 %1632
        %1634 = vrot.lane.b32.xlu0 %v1015, 16
        %v1635 = vpop.permute.xlu0 %1634
        %1636 = vrot.lane.b32.xlu0 %v1016, 16
        %v1637 = vpop.permute.xlu0 %1636
        %1638 = vrot.lane.b32.xlu0 %v1017, 16
        %v1639 = vpop.permute.xlu0 %1638
        %1640 = vrot.lane.b32.xlu0 %v1018, 16
        %v1641 = vpop.permute.xlu0 %1640
        %1642 = vrot.lane.b32.xlu0 %v1019, 16
        %v1643 = vpop.permute.xlu0 %1642
        %v1652 = vsel %vm836, %v1004, %v1629
        %v1653 = vsel %vm836, %v1005, %v1631
        %v1654 = vsel %vm836, %v1006, %v1633
        %v1655 = vsel %vm836, %v1007, %v1635
        %v1656 = vsel %vm836, %v1008, %v1637
        %v1657 = vsel %vm836, %v1009, %v1639
        %v1658 = vsel %vm836, %v1010, %v1641
        %v1659 = vsel %vm836, %v1011, %v1643
        %v1661 = vperm.slane %v1056, 0
        %v1664 = vsel %vm627, %v1652, 0
        %v1667 = vsel %vm627, %v1653, 0
        %v1670 = vsel %vm627, %v1654, 0
        %v1673 = vsel %vm627, %v1655, 0
        %v1676 = vsel %vm627, %v1656, 0
        %v1679 = vsel %vm627, %v1657, 0
        %v1682 = vsel %vm627, %v1658, 0
        %v1685 = vsel %vm627, %v1659, 0
        %1687 = vmatpush.msra.mxu0 %v1035
        %1688 = vmatpush.msra.mxu0 %v1034
        %1689 = vmatpush.msra.mxu0 %v1033
        %1690 = vmatpush.msra.mxu0 %v1032
        %1691 = vmatpush.msra.mxu0 %v1031
        %1692 = vmatpush.msra.mxu0 %v1030
        %1693 = vmatpush.msra.mxu0 %v1029
        %1694 = vmatpush.msra.mxu0 %v1028
        %1695 = vmatpush.msra.mxu0 %v1027
        %1696 = vmatpush.msra.mxu0 %v1026
        %1697 = vmatpush.msra.mxu0 %v1025
        %1698 = vmatpush.msra.mxu0 %v1024
        %1699 = vmatpush.msra.mxu0 %v1023
        %1700 = vmatpush.msra.mxu0 %v1022
        %1701 = vmatpush.msra.mxu0 %v1021
        %1702 = vmatpush.msra.mxu0 %v1020
        %1703 = vmatmul.f32.gmra.mxu0 %v1556
        %v1704 = vpop.f32.mrf.mxu0
        %v1705 = vadd.f32 %v1661, %v1704
        %1706 = vmatmul.f32.gmra.mxu0 %v1557
        %v1707 = vpop.f32.mrf.mxu0
        %v1708 = vadd.f32 %v1661, %v1707
        %1709 = vmatmul.f32.gmra.mxu0 %v1558
        %v1710 = vpop.f32.mrf.mxu0
        %v1711 = vadd.f32 %v1661, %v1710
        %1712 = vmatmul.f32.gmra.mxu0 %v1559
        %v1713 = vpop.f32.mrf.mxu0
        %v1714 = vadd.f32 %v1661, %v1713
        %1715 = vmatmul.f32.gmra.mxu0 %v1560
        %v1716 = vpop.f32.mrf.mxu0
        %v1717 = vadd.f32 %v1661, %v1716
        %1718 = vmatmul.f32.gmra.mxu0 %v1561
        %v1719 = vpop.f32.mrf.mxu0
        %v1720 = vadd.f32 %v1661, %v1719
        %1721 = vmatmul.f32.gmra.mxu0 %v1562
        %v1722 = vpop.f32.mrf.mxu0
        %v1723 = vadd.f32 %v1661, %v1722
        %1724 = vmatmul.f32.gmra.mxu0 %v1563
        %v1725 = vpop.f32.mrf.mxu0
        %v1726 = vadd.f32 %v1661, %v1725
        %1727 = vdwg.mxu0
        %1728 = vmatpush.msra.mxu0 %v1051
        %1729 = vmatpush.msra.mxu0 %v1050
        %1730 = vmatpush.msra.mxu0 %v1049
        %1731 = vmatpush.msra.mxu0 %v1048
        %1732 = vmatpush.msra.mxu0 %v1047
        %1733 = vmatpush.msra.mxu0 %v1046
        %1734 = vmatpush.msra.mxu0 %v1045
        %1735 = vmatpush.msra.mxu0 %v1044
        %1736 = vmatpush.msra.mxu0 %v1043
        %1737 = vmatpush.msra.mxu0 %v1042
        %1738 = vmatpush.msra.mxu0 %v1041
        %1739 = vmatpush.msra.mxu0 %v1040
        %1740 = vmatpush.msra.mxu0 %v1039
        %1741 = vmatpush.msra.mxu0 %v1038
        %1742 = vmatpush.msra.mxu0 %v1037
        %1743 = vmatpush.msra.mxu0 %v1036
        %1744 = vmatmul.f32.gmra.mxu0 %v1612
        %v1745 = vpop.f32.mrf.mxu0
        %v1746 = vadd.f32 %v1705, %v1745
        %1747 = vmatmul.f32.gmra.mxu0 %v1613
        %v1748 = vpop.f32.mrf.mxu0
        %v1749 = vadd.f32 %v1708, %v1748
        %1750 = vmatmul.f32.gmra.mxu0 %v1614
        %v1751 = vpop.f32.mrf.mxu0
        %v1752 = vadd.f32 %v1711, %v1751
        %1753 = vmatmul.f32.gmra.mxu0 %v1615
        %v1754 = vpop.f32.mrf.mxu0
        %v1755 = vadd.f32 %v1714, %v1754
        %1756 = vmatmul.f32.gmra.mxu0 %v1616
        %v1757 = vpop.f32.mrf.mxu0
        %v1758 = vadd.f32 %v1717, %v1757
        %1759 = vmatmul.f32.gmra.mxu0 %v1617
        %v1760 = vpop.f32.mrf.mxu0
        %v1761 = vadd.f32 %v1720, %v1760
        %1762 = vmatmul.f32.gmra.mxu0 %v1618
        %v1763 = vpop.f32.mrf.mxu0
        %v1764 = vadd.f32 %v1723, %v1763
        %1765 = vmatmul.f32.gmra.mxu0 %v1619
        %v1766 = vpop.f32.mrf.mxu0
        %v1767 = vadd.f32 %v1726, %v1766
        %1768 = vdwg.mxu0
        %1769 = vmatpush.msra.mxu0 0.0
        %1770 = vmatpush.msra.mxu0 0.0
        %1771 = vmatpush.msra.mxu0 0.0
        %1772 = vmatpush.msra.mxu0 0.0
        %1773 = vmatpush.msra.mxu0 0.0
        %1774 = vmatpush.msra.mxu0 0.0
        %1775 = vmatpush.msra.mxu0 0.0
        %1776 = vmatpush.msra.mxu0 0.0
        %1777 = vmatpush.msra.mxu0 0.0
        %1778 = vmatpush.msra.mxu0 0.0
        %1779 = vmatpush.msra.mxu0 0.0
        %1780 = vmatpush.msra.mxu0 0.0
        %1781 = vmatpush.msra.mxu0 %v1055
        %1782 = vmatpush.msra.mxu0 %v1054
        %1783 = vmatpush.msra.mxu0 %v1053
        %1784 = vmatpush.msra.mxu0 %v1052
        %1785 = vmatmul.f32.gmra.mxu0 %v1664
        %v1786 = vpop.f32.mrf.mxu0
        %v1787 = vadd.f32 %v1746, %v1786
        %1788 = vmatmul.f32.gmra.mxu0 %v1667
        %v1789 = vpop.f32.mrf.mxu0
        %v1790 = vadd.f32 %v1749, %v1789
        %1791 = vmatmul.f32.gmra.mxu0 %v1670
        %v1792 = vpop.f32.mrf.mxu0
        %v1793 = vadd.f32 %v1752, %v1792
        %1794 = vmatmul.f32.gmra.mxu0 %v1673
        %v1795 = vpop.f32.mrf.mxu0
        %v1796 = vadd.f32 %v1755, %v1795
        %1797 = vmatmul.f32.gmra.mxu0 %v1676
        %v1798 = vpop.f32.mrf.mxu0
        %v1799 = vadd.f32 %v1758, %v1798
        %1800 = vmatmul.f32.gmra.mxu0 %v1679
        %v1801 = vpop.f32.mrf.mxu0
        %v1802 = vadd.f32 %v1761, %v1801
        %1803 = vmatmul.f32.gmra.mxu0 %v1682
        %v1804 = vpop.f32.mrf.mxu0
        %v1805 = vadd.f32 %v1764, %v1804
        %1806 = vmatmul.f32.gmra.mxu0 %v1685
        %v1807 = vpop.f32.mrf.mxu0
        %v1808 = vadd.f32 %v1767, %v1807
        %1809 = vdwg.mxu0
        %v1810 = vmax.f32 %v1787, 0.0
        %v1811 = vmax.f32 %v1790, 0.0
        %v1812 = vmax.f32 %v1793, 0.0
        %v1813 = vmax.f32 %v1796, 0.0
        %v1814 = vmax.f32 %v1799, 0.0
        %v1815 = vmax.f32 %v1802, 0.0
        %v1816 = vmax.f32 %v1805, 0.0
        %v1817 = vmax.f32 %v1808, 0.0
        %1818 = vst.msk [vmem:[#allocation3] sm:$0xff] %vm836, 0.0
        %1819 = vst.msk [vmem:[#allocation3 + $0x8] sm:$0x3] %vm838, 0.0
        %s1820 = scalar_lea.vmem [#allocation3], 144
        %1821 = vst.msk [vmem:[%s1820] sm:$0xff] %vm836, 0.0
        %1822 = vst.msk [vmem:[%s1820 + $0x8] sm:$0x3] %vm838, 0.0
        %1823 = vst.msk [vmem:[#allocation3] sm:$0x1] %vm843, 0.0
        %1824 = vst.msk [vmem:[#allocation3 + $0x10] sm:$0x1] %vm843, 0.0
        %1825 = vst.msk [vmem:[#allocation3 + $0x20] sm:$0x1] %vm843, 0.0
        %1826 = vst.msk [vmem:[#allocation3 + $0x30] sm:$0x1] %vm843, 0.0
        %1827 = vst.msk [vmem:[#allocation3 + $0x40] sm:$0x1] %vm843, 0.0
        %1828 = vst.msk [vmem:[#allocation3 + $0x50] sm:$0x1] %vm843, 0.0
        %1829 = vst.msk [vmem:[#allocation3 + $0x60] sm:$0x1] %vm843, 0.0
        %1830 = vst.msk [vmem:[#allocation3 + $0x70] sm:$0x1] %vm843, 0.0
        %1831 = vst.msk [vmem:[#allocation3 + $0x80] sm:$0x1] %vm843, 0.0
        %1832 = vst.msk [vmem:[#allocation3 + $0x90] sm:$0x1] %vm843, 0.0
        %1833 = vst.msk [vmem:[#allocation3 + $0x9] sm:$0x1] %vm843, 0.0
        %1834 = vst.msk [vmem:[#allocation3 + $0x19] sm:$0x1] %vm843, 0.0
        %1835 = vst.msk [vmem:[#allocation3 + $0x29] sm:$0x1] %vm843, 0.0
        %1836 = vst.msk [vmem:[#allocation3 + $0x39] sm:$0x1] %vm843, 0.0
        %1837 = vst.msk [vmem:[#allocation3 + $0x49] sm:$0x1] %vm843, 0.0
        %1838 = vst.msk [vmem:[#allocation3 + $0x59] sm:$0x1] %vm843, 0.0
        %1839 = vst.msk [vmem:[#allocation3 + $0x69] sm:$0x1] %vm843, 0.0
        %1840 = vst.msk [vmem:[#allocation3 + $0x79] sm:$0x1] %vm843, 0.0
        %1841 = vst.msk [vmem:[#allocation3 + $0x89] sm:$0x1] %vm843, 0.0
        %1842 = vst.msk [vmem:[#allocation3 + $0x99] sm:$0x1] %vm843, 0.0
        %s1843 = scalar_lea.vmem [#allocation3], 16
        %1844 = vst.msk [vmem:[%s1843 + $0x1] sm:$0xff] %vm836, %v1810
        %1845 = vst.msk [vmem:[%s1843 + $0x11] sm:$0xff] %vm836, %v1811
        %1846 = vst.msk [vmem:[%s1843 + $0x21] sm:$0xff] %vm836, %v1812
        %1847 = vst.msk [vmem:[%s1843 + $0x31] sm:$0xff] %vm836, %v1813
        %1848 = vst.msk [vmem:[%s1843 + $0x41] sm:$0xff] %vm836, %v1814
        %1849 = vst.msk [vmem:[%s1843 + $0x51] sm:$0xff] %vm836, %v1815
        %1850 = vst.msk [vmem:[%s1843 + $0x61] sm:$0xff] %vm836, %v1816
        %1851 = vst.msk [vmem:[%s1843 + $0x71] sm:$0xff] %vm836, %v1817
        %v1852 = vld [vmem:[#allocation3] sm:$0xff]
        %v1853 = vld [vmem:[#allocation3 + $0x10] sm:$0xff]
        %v1854 = vld [vmem:[#allocation3 + $0x20] sm:$0xff]
        %v1855 = vld [vmem:[#allocation3 + $0x30] sm:$0xff]
        %v1856 = vld [vmem:[#allocation3 + $0x40] sm:$0xff]
        %v1857 = vld [vmem:[#allocation3 + $0x50] sm:$0xff]
        %v1858 = vld [vmem:[#allocation3 + $0x60] sm:$0xff]
        %v1859 = vld [vmem:[#allocation3 + $0x70] sm:$0xff]
        %v1860 = vld [vmem:[#allocation3 + $0x1] sm:$0xff]
        %v1861 = vld [vmem:[#allocation3 + $0x11] sm:$0xff]
        %v1862 = vld [vmem:[#allocation3 + $0x21] sm:$0xff]
        %v1863 = vld [vmem:[#allocation3 + $0x31] sm:$0xff]
        %v1864 = vld [vmem:[#allocation3 + $0x41] sm:$0xff]
        %v1865 = vld [vmem:[#allocation3 + $0x51] sm:$0xff]
        %v1866 = vld [vmem:[#allocation3 + $0x61] sm:$0xff]
        %v1867 = vld [vmem:[#allocation3 + $0x71] sm:$0xff]
        %v1868 = vld [vmem:[#allocation3 + $0x2] sm:$0xff]
        %v1869 = vld [vmem:[#allocation3 + $0x12] sm:$0xff]
        %v1870 = vld [vmem:[#allocation3 + $0x22] sm:$0xff]
        %v1871 = vld [vmem:[#allocation3 + $0x32] sm:$0xff]
        %v1872 = vld [vmem:[#allocation3 + $0x42] sm:$0xff]
        %v1873 = vld [vmem:[#allocation3 + $0x52] sm:$0xff]
        %v1874 = vld [vmem:[#allocation3 + $0x62] sm:$0xff]
        %v1875 = vld [vmem:[#allocation3 + $0x72] sm:$0xff]
        %v1876 = vld [vmem:[%s1843] sm:$0xff]
        %v1877 = vld [vmem:[%s1843 + $0x10] sm:$0xff]
        %v1878 = vld [vmem:[%s1843 + $0x20] sm:$0xff]
        %v1879 = vld [vmem:[%s1843 + $0x30] sm:$0xff]
        %v1880 = vld [vmem:[%s1843 + $0x40] sm:$0xff]
        %v1881 = vld [vmem:[%s1843 + $0x50] sm:$0xff]
        %v1882 = vld [vmem:[%s1843 + $0x60] sm:$0xff]
        %v1883 = vld [vmem:[%s1843 + $0x70] sm:$0xff]
        %v1884 = vld [vmem:[%s1843 + $0x1] sm:$0xff]
        %v1885 = vld [vmem:[%s1843 + $0x11] sm:$0xff]
        %v1886 = vld [vmem:[%s1843 + $0x21] sm:$0xff]
        %v1887 = vld [vmem:[%s1843 + $0x31] sm:$0xff]
        %v1888 = vld [vmem:[%s1843 + $0x41] sm:$0xff]
        %v1889 = vld [vmem:[%s1843 + $0x51] sm:$0xff]
        %v1890 = vld [vmem:[%s1843 + $0x61] sm:$0xff]
        %v1891 = vld [vmem:[%s1843 + $0x71] sm:$0xff]
        %v1892 = vld [vmem:[%s1843 + $0x2] sm:$0xff]
        %v1893 = vld [vmem:[%s1843 + $0x12] sm:$0xff]
        %v1894 = vld [vmem:[%s1843 + $0x22] sm:$0xff]
        %v1895 = vld [vmem:[%s1843 + $0x32] sm:$0xff]
        %v1896 = vld [vmem:[%s1843 + $0x42] sm:$0xff]
        %v1897 = vld [vmem:[%s1843 + $0x52] sm:$0xff]
        %v1898 = vld [vmem:[%s1843 + $0x62] sm:$0xff]
        %v1899 = vld [vmem:[%s1843 + $0x72] sm:$0xff]
        %s1900 = scalar_lea.vmem [#allocation3], 32
        %v1901 = vld [vmem:[%s1900] sm:$0xff]
        %v1902 = vld [vmem:[%s1900 + $0x10] sm:$0xff]
        %v1903 = vld [vmem:[%s1900 + $0x20] sm:$0xff]
        %v1904 = vld [vmem:[%s1900 + $0x30] sm:$0xff]
        %v1905 = vld [vmem:[%s1900 + $0x40] sm:$0xff]
        %v1906 = vld [vmem:[%s1900 + $0x50] sm:$0xff]
        %v1907 = vld [vmem:[%s1900 + $0x60] sm:$0xff]
        %v1908 = vld [vmem:[%s1900 + $0x70] sm:$0xff]
        %v1909 = vld [vmem:[%s1900 + $0x1] sm:$0xff]
        %v1910 = vld [vmem:[%s1900 + $0x11] sm:$0xff]
        %v1911 = vld [vmem:[%s1900 + $0x21] sm:$0xff]
        %v1912 = vld [vmem:[%s1900 + $0x31] sm:$0xff]
        %v1913 = vld [vmem:[%s1900 + $0x41] sm:$0xff]
        %v1914 = vld [vmem:[%s1900 + $0x51] sm:$0xff]
        %v1915 = vld [vmem:[%s1900 + $0x61] sm:$0xff]
        %v1916 = vld [vmem:[%s1900 + $0x71] sm:$0xff]
        %v1917 = vld [vmem:[%s1900 + $0x2] sm:$0xff]
        %v1918 = vld [vmem:[%s1900 + $0x12] sm:$0xff]
        %v1919 = vld [vmem:[%s1900 + $0x22] sm:$0xff]
        %v1920 = vld [vmem:[%s1900 + $0x32] sm:$0xff]
        %v1921 = vld [vmem:[%s1900 + $0x42] sm:$0xff]
        %v1922 = vld [vmem:[%s1900 + $0x52] sm:$0xff]
        %v1923 = vld [vmem:[%s1900 + $0x62] sm:$0xff]
        %v1924 = vld [vmem:[%s1900 + $0x72] sm:$0xff]
        %v1925 = vld [vmem:[%s6] sm:$0xff]
        %v1926 = vld [vmem:[%s6 + $0x8] sm:$0xff]
        %v1927 = vld [vmem:[%s6 + $0x10] sm:$0xff]
        %v1928 = vld [vmem:[%s6 + $0x18] sm:$0xff]
        %v1929 = vld [vmem:[%s6 + $0x20] sm:$0xff]
        %v1930 = vld [vmem:[%s6 + $0x28] sm:$0xff]
        %v1931 = vld [vmem:[%s6 + $0x30] sm:$0xff]
        %v1932 = vld [vmem:[%s6 + $0x38] sm:$0xff]
        %v1933 = vld [vmem:[%s6 + $0x40] sm:$0xff]
        %v1934 = vld [vmem:[%s6 + $0x48] sm:$0xff]
        %v1935 = vld [vmem:[%s6 + $0x50] sm:$0xff]
        %v1936 = vld [vmem:[%s6 + $0x58] sm:$0xff]
        %v1937 = vld [vmem:[%s6 + $0x60] sm:$0xff]
        %v1938 = vld [vmem:[%s6 + $0x68] sm:$0xff]
        %v1939 = vld [vmem:[%s6 + $0x70] sm:$0xff]
        %v1940 = vld [vmem:[%s6 + $0x78] sm:$0xff]
        %v1941 = vld [vmem:[%s6 + $0x80] sm:$0xff]
        %v1942 = vld [vmem:[%s6 + $0x88] sm:$0xff]
        %v1943 = vld [vmem:[%s7] sm:$0x1]
        %1952 = vrot.lane.b32.xlu0 %v1860, 16
        %v1953 = vpop.permute.xlu0 %1952
        %1954 = vrot.lane.b32.xlu0 %v1861, 16
        %v1955 = vpop.permute.xlu0 %1954
        %1956 = vrot.lane.b32.xlu0 %v1862, 16
        %v1957 = vpop.permute.xlu0 %1956
        %1958 = vrot.lane.b32.xlu0 %v1863, 16
        %v1959 = vpop.permute.xlu0 %1958
        %1960 = vrot.lane.b32.xlu0 %v1864, 16
        %v1961 = vpop.permute.xlu0 %1960
        %1962 = vrot.lane.b32.xlu0 %v1865, 16
        %v1963 = vpop.permute.xlu0 %1962
        %1964 = vrot.lane.b32.xlu0 %v1866, 16
        %v1965 = vpop.permute.xlu0 %1964
        %1966 = vrot.lane.b32.xlu0 %v1867, 16
        %v1967 = vpop.permute.xlu0 %1966
        %1984 = vrot.lane.b32.xlu0 %v1868, 32
        %v1985 = vpop.permute.xlu0 %1984
        %1986 = vrot.lane.b32.xlu0 %v1869, 32
        %v1987 = vpop.permute.xlu0 %1986
        %1988 = vrot.lane.b32.xlu0 %v1870, 32
        %v1989 = vpop.permute.xlu0 %1988
        %1990 = vrot.lane.b32.xlu0 %v1871, 32
        %v1991 = vpop.permute.xlu0 %1990
        %1992 = vrot.lane.b32.xlu0 %v1872, 32
        %v1993 = vpop.permute.xlu0 %1992
        %1994 = vrot.lane.b32.xlu0 %v1873, 32
        %v1995 = vpop.permute.xlu0 %1994
        %1996 = vrot.lane.b32.xlu0 %v1874, 32
        %v1997 = vpop.permute.xlu0 %1996
        %1998 = vrot.lane.b32.xlu0 %v1875, 32
        %v1999 = vpop.permute.xlu0 %1998
        %2016 = vrot.lane.b32.xlu0 %v1876, 48
        %v2017 = vpop.permute.xlu0 %2016
        %2018 = vrot.lane.b32.xlu0 %v1877, 48
        %v2019 = vpop.permute.xlu0 %2018
        %2020 = vrot.lane.b32.xlu0 %v1878, 48
        %v2021 = vpop.permute.xlu0 %2020
        %2022 = vrot.lane.b32.xlu0 %v1879, 48
        %v2023 = vpop.permute.xlu0 %2022
        %2024 = vrot.lane.b32.xlu0 %v1880, 48
        %v2025 = vpop.permute.xlu0 %2024
        %2026 = vrot.lane.b32.xlu0 %v1881, 48
        %v2027 = vpop.permute.xlu0 %2026
        %2028 = vrot.lane.b32.xlu0 %v1882, 48
        %v2029 = vpop.permute.xlu0 %2028
        %2030 = vrot.lane.b32.xlu0 %v1883, 48
        %v2031 = vpop.permute.xlu0 %2030
        %2048 = vrot.lane.b32.xlu0 %v1884, 64
        %v2049 = vpop.permute.xlu0 %2048
        %2050 = vrot.lane.b32.xlu0 %v1885, 64
        %v2051 = vpop.permute.xlu0 %2050
        %2052 = vrot.lane.b32.xlu0 %v1886, 64
        %v2053 = vpop.permute.xlu0 %2052
        %2054 = vrot.lane.b32.xlu0 %v1887, 64
        %v2055 = vpop.permute.xlu0 %2054
        %2056 = vrot.lane.b32.xlu0 %v1888, 64
        %v2057 = vpop.permute.xlu0 %2056
        %2058 = vrot.lane.b32.xlu0 %v1889, 64
        %v2059 = vpop.permute.xlu0 %2058
        %2060 = vrot.lane.b32.xlu0 %v1890, 64
        %v2061 = vpop.permute.xlu0 %2060
        %2062 = vrot.lane.b32.xlu0 %v1891, 64
        %v2063 = vpop.permute.xlu0 %2062
        %2080 = vrot.lane.b32.xlu0 %v1892, 80
        %v2081 = vpop.permute.xlu0 %2080
        %2082 = vrot.lane.b32.xlu0 %v1893, 80
        %v2083 = vpop.permute.xlu0 %2082
        %2084 = vrot.lane.b32.xlu0 %v1894, 80
        %v2085 = vpop.permute.xlu0 %2084
        %2086 = vrot.lane.b32.xlu0 %v1895, 80
        %v2087 = vpop.permute.xlu0 %2086
        %2088 = vrot.lane.b32.xlu0 %v1896, 80
        %v2089 = vpop.permute.xlu0 %2088
        %2090 = vrot.lane.b32.xlu0 %v1897, 80
        %v2091 = vpop.permute.xlu0 %2090
        %2092 = vrot.lane.b32.xlu0 %v1898, 80
        %v2093 = vpop.permute.xlu0 %2092
        %2094 = vrot.lane.b32.xlu0 %v1899, 80
        %v2095 = vpop.permute.xlu0 %2094
        %2112 = vrot.lane.b32.xlu0 %v1901, 96
        %v2113 = vpop.permute.xlu0 %2112
        %2114 = vrot.lane.b32.xlu0 %v1902, 96
        %v2115 = vpop.permute.xlu0 %2114
        %2116 = vrot.lane.b32.xlu0 %v1903, 96
        %v2117 = vpop.permute.xlu0 %2116
        %2118 = vrot.lane.b32.xlu0 %v1904, 96
        %v2119 = vpop.permute.xlu0 %2118
        %2120 = vrot.lane.b32.xlu0 %v1905, 96
        %v2121 = vpop.permute.xlu0 %2120
        %2122 = vrot.lane.b32.xlu0 %v1906, 96
        %v2123 = vpop.permute.xlu0 %2122
        %2124 = vrot.lane.b32.xlu0 %v1907, 96
        %v2125 = vpop.permute.xlu0 %2124
        %2126 = vrot.lane.b32.xlu0 %v1908, 96
        %v2127 = vpop.permute.xlu0 %2126
        %2144 = vrot.lane.b32.xlu0 %v1909, 112
        %v2145 = vpop.permute.xlu0 %2144
        %2146 = vrot.lane.b32.xlu0 %v1910, 112
        %v2147 = vpop.permute.xlu0 %2146
        %2148 = vrot.lane.b32.xlu0 %v1911, 112
        %v2149 = vpop.permute.xlu0 %2148
        %2150 = vrot.lane.b32.xlu0 %v1912, 112
        %v2151 = vpop.permute.xlu0 %2150
        %2152 = vrot.lane.b32.xlu0 %v1913, 112
        %v2153 = vpop.permute.xlu0 %2152
        %2154 = vrot.lane.b32.xlu0 %v1914, 112
        %v2155 = vpop.permute.xlu0 %2154
        %2156 = vrot.lane.b32.xlu0 %v1915, 112
        %v2157 = vpop.permute.xlu0 %2156
        %2158 = vrot.lane.b32.xlu0 %v1916, 112
        %v2159 = vpop.permute.xlu0 %2158
        %v2168 = vsel %vm836, %v1852, %v1953
        %v2169 = vsel %vm836, %v1853, %v1955
        %v2170 = vsel %vm836, %v1854, %v1957
        %v2171 = vsel %vm836, %v1855, %v1959
        %v2172 = vsel %vm836, %v1856, %v1961
        %v2173 = vsel %vm836, %v1857, %v1963
        %v2174 = vsel %vm836, %v1858, %v1965
        %v2175 = vsel %vm836, %v1859, %v1967
        %v2176 = vsel %vm627, %v2168, %v1985
        %v2177 = vsel %vm627, %v2169, %v1987
        %v2178 = vsel %vm627, %v2170, %v1989
        %v2179 = vsel %vm627, %v2171, %v1991
        %v2180 = vsel %vm627, %v2172, %v1993
        %v2181 = vsel %vm627, %v2173, %v1995
        %v2182 = vsel %vm627, %v2174, %v1997
        %v2183 = vsel %vm627, %v2175, %v1999
        %v2184 = vsel %vm1521, %v2176, %v2017
        %v2185 = vsel %vm1521, %v2177, %v2019
        %v2186 = vsel %vm1521, %v2178, %v2021
        %v2187 = vsel %vm1521, %v2179, %v2023
        %v2188 = vsel %vm1521, %v2180, %v2025
        %v2189 = vsel %vm1521, %v2181, %v2027
        %v2190 = vsel %vm1521, %v2182, %v2029
        %v2191 = vsel %vm1521, %v2183, %v2031
        %v2192 = vsel %vm636, %v2184, %v2049
        %v2193 = vsel %vm636, %v2185, %v2051
        %v2194 = vsel %vm636, %v2186, %v2053
        %v2195 = vsel %vm636, %v2187, %v2055
        %v2196 = vsel %vm636, %v2188, %v2057
        %v2197 = vsel %vm636, %v2189, %v2059
        %v2198 = vsel %vm636, %v2190, %v2061
        %v2199 = vsel %vm636, %v2191, %v2063
        %v2200 = vsel %vm1538, %v2192, %v2081
        %v2201 = vsel %vm1538, %v2193, %v2083
        %v2202 = vsel %vm1538, %v2194, %v2085
        %v2203 = vsel %vm1538, %v2195, %v2087
        %v2204 = vsel %vm1538, %v2196, %v2089
        %v2205 = vsel %vm1538, %v2197, %v2091
        %v2206 = vsel %vm1538, %v2198, %v2093
        %v2207 = vsel %vm1538, %v2199, %v2095
        %v2208 = vsel %vm645, %v2200, %v2113
        %v2209 = vsel %vm645, %v2201, %v2115
        %v2210 = vsel %vm645, %v2202, %v2117
        %v2211 = vsel %vm645, %v2203, %v2119
        %v2212 = vsel %vm645, %v2204, %v2121
        %v2213 = vsel %vm645, %v2205, %v2123
        %v2214 = vsel %vm645, %v2206, %v2125
        %v2215 = vsel %vm645, %v2207, %v2127
        %v2216 = vsel %vm1555, %v2208, %v2145
        %v2217 = vsel %vm1555, %v2209, %v2147
        %v2218 = vsel %vm1555, %v2210, %v2149
        %v2219 = vsel %vm1555, %v2211, %v2151
        %v2220 = vsel %vm1555, %v2212, %v2153
        %v2221 = vsel %vm1555, %v2213, %v2155
        %v2222 = vsel %vm1555, %v2214, %v2157
        %v2223 = vsel %vm1555, %v2215, %v2159
        %v2225 = vperm.slane %v1943, 0
        %v2228 = vsel %vm836, %v1917, 0
        %v2231 = vsel %vm836, %v1918, 0
        %v2234 = vsel %vm836, %v1919, 0
        %v2237 = vsel %vm836, %v1920, 0
        %v2240 = vsel %vm836, %v1921, 0
        %v2243 = vsel %vm836, %v1922, 0
        %v2246 = vsel %vm836, %v1923, 0
        %v2249 = vsel %vm836, %v1924, 0
        %2251 = vmatpush.msra.mxu0 %v1940
        %2252 = vmatpush.msra.mxu0 %v1939
        %2253 = vmatpush.msra.mxu0 %v1938
        %2254 = vmatpush.msra.mxu0 %v1937
        %2255 = vmatpush.msra.mxu0 %v1936
        %2256 = vmatpush.msra.mxu0 %v1935
        %2257 = vmatpush.msra.mxu0 %v1934
        %2258 = vmatpush.msra.mxu0 %v1933
        %2259 = vmatpush.msra.mxu0 %v1932
        %2260 = vmatpush.msra.mxu0 %v1931
        %2261 = vmatpush.msra.mxu0 %v1930
        %2262 = vmatpush.msra.mxu0 %v1929
        %2263 = vmatpush.msra.mxu0 %v1928
        %2264 = vmatpush.msra.mxu0 %v1927
        %2265 = vmatpush.msra.mxu0 %v1926
        %2266 = vmatpush.msra.mxu0 %v1925
        %2267 = vmatmul.f32.gmra.mxu0 %v2216
        %v2268 = vpop.f32.mrf.mxu0
        %v2269 = vadd.f32 %v2225, %v2268
        %2270 = vmatmul.f32.gmra.mxu0 %v2217
        %v2271 = vpop.f32.mrf.mxu0
        %v2272 = vadd.f32 %v2225, %v2271
        %2273 = vmatmul.f32.gmra.mxu0 %v2218
        %v2274 = vpop.f32.mrf.mxu0
        %v2275 = vadd.f32 %v2225, %v2274
        %2276 = vmatmul.f32.gmra.mxu0 %v2219
        %v2277 = vpop.f32.mrf.mxu0
        %v2278 = vadd.f32 %v2225, %v2277
        %2279 = vmatmul.f32.gmra.mxu0 %v2220
        %v2280 = vpop.f32.mrf.mxu0
        %v2281 = vadd.f32 %v2225, %v2280
        %2282 = vmatmul.f32.gmra.mxu0 %v2221
        %v2283 = vpop.f32.mrf.mxu0
        %v2284 = vadd.f32 %v2225, %v2283
        %2285 = vmatmul.f32.gmra.mxu0 %v2222
        %v2286 = vpop.f32.mrf.mxu0
        %v2287 = vadd.f32 %v2225, %v2286
        %2288 = vmatmul.f32.gmra.mxu0 %v2223
        %v2289 = vpop.f32.mrf.mxu0
        %v2290 = vadd.f32 %v2225, %v2289
        %2291 = vdwg.mxu0
        %2292 = vmatpush.msra.mxu0 0.0
        %2293 = vmatpush.msra.mxu0 0.0
        %2294 = vmatpush.msra.mxu0 0.0
        %2295 = vmatpush.msra.mxu0 0.0
        %2296 = vmatpush.msra.mxu0 0.0
        %2297 = vmatpush.msra.mxu0 0.0
        %2298 = vmatpush.msra.mxu0 0.0
        %2299 = vmatpush.msra.mxu0 0.0
        %2300 = vmatpush.msra.mxu0 0.0
        %2301 = vmatpush.msra.mxu0 0.0
        %2302 = vmatpush.msra.mxu0 0.0
        %2303 = vmatpush.msra.mxu0 0.0
        %2304 = vmatpush.msra.mxu0 0.0
        %2305 = vmatpush.msra.mxu0 0.0
        %2306 = vmatpush.msra.mxu0 %v1942
        %2307 = vmatpush.msra.mxu0 %v1941
        %2308 = vmatmul.f32.gmra.mxu0 %v2228
        %v2309 = vpop.f32.mrf.mxu0
        %v2310 = vadd.f32 %v2269, %v2309
        %2311 = vmatmul.f32.gmra.mxu0 %v2231
        %v2312 = vpop.f32.mrf.mxu0
        %v2313 = vadd.f32 %v2272, %v2312
        %2314 = vmatmul.f32.gmra.mxu0 %v2234
        %v2315 = vpop.f32.mrf.mxu0
        %v2316 = vadd.f32 %v2275, %v2315
        %2317 = vmatmul.f32.gmra.mxu0 %v2237
        %v2318 = vpop.f32.mrf.mxu0
        %v2319 = vadd.f32 %v2278, %v2318
        %2320 = vmatmul.f32.gmra.mxu0 %v2240
        %v2321 = vpop.f32.mrf.mxu0
        %v2322 = vadd.f32 %v2281, %v2321
        %2323 = vmatmul.f32.gmra.mxu0 %v2243
        %v2324 = vpop.f32.mrf.mxu0
        %v2325 = vadd.f32 %v2284, %v2324
        %2326 = vmatmul.f32.gmra.mxu0 %v2246
        %v2327 = vpop.f32.mrf.mxu0
        %v2328 = vadd.f32 %v2287, %v2327
        %2329 = vmatmul.f32.gmra.mxu0 %v2249
        %v2330 = vpop.f32.mrf.mxu0
        %v2331 = vadd.f32 %v2290, %v2330
        %2332 = vdwg.mxu0
        %v2333 = vmax.f32 %v2310, 0.0
        %v2334 = vmax.f32 %v2313, 0.0
        %v2335 = vmax.f32 %v2316, 0.0
        %v2336 = vmax.f32 %v2319, 0.0
        %v2337 = vmax.f32 %v2322, 0.0
        %v2338 = vmax.f32 %v2325, 0.0
        %v2339 = vmax.f32 %v2328, 0.0
        %v2340 = vmax.f32 %v2331, 0.0
        %2341 = vst.msk [vmem:[%s313] sm:$0xff] %vm836, %v2333
        %2342 = vst.msk [vmem:[%s313 + $0x8] sm:$0xff] %vm836, %v2334
        %2343 = vst.msk [vmem:[%s313 + $0x10] sm:$0xff] %vm836, %v2335
        %2344 = vst.msk [vmem:[%s313 + $0x18] sm:$0xff] %vm836, %v2336
        %2345 = vst.msk [vmem:[%s313 + $0x20] sm:$0xff] %vm836, %v2337
        %2346 = vst.msk [vmem:[%s313 + $0x28] sm:$0xff] %vm836, %v2338
        %2347 = vst.msk [vmem:[%s313 + $0x30] sm:$0xff] %vm836, %v2339
        %2348 = vst.msk [vmem:[%s313 + $0x38] sm:$0xff] %vm836, %v2340
        %s2349 = sand.u32 %s208, 1
        %s2350 = scalar_lea.sflag [#allocation5], %s2349
        %s2351 = sand.u32 %s208, 1
        %s2352 = smul.addr %s2351, 64
        %s2353 = scalar_lea.vmem [#allocation4], %s2352
        // Predicated region
        $region53: #{tpu_custom_call.1} parent=51 // pred_check
          %p2354 = pneg %p218
        $region54: #{tpu_custom_call.1} parent=51 // pred_check_branch
          %2356 = sbr.rel (%p2354) target = $region56
        $region55: #{tpu_custom_call.1} parent=51 // pred_region
          %2358 = vsyncadd %s2350, 0
          %s2359 = smul.addr %s22, 8
          %s2360 = smul.addr %s2359, 8
          %s2361 = scalar_lea.hbm %s8, %s2360
          %s2362 = sshll.u32 %s2353, 4
          %s2363 = int_to_ptr.vmem [resolvable:$true] %s2362
          %s2364 = sshll.u32 %s2361, 4
          %s2365 = int_to_ptr.hbm [resolvable:$true] %s2364
          %2370 = dma.vmem_to_hbm [thread:$0]  %s2363, 1024, %s2365, %s2350, 128, 128, 8
        $region56: #{tpu_custom_call.1} parent=51 // pred_fallthru
          _
      $region52: #{tpu_custom_call.1} parent=5 // pred_fallthru
        _
      %p2371 = scmp.le.s32.totalorder 2, %s17
      // Predicated region
      $region57: #{tpu_custom_call.1} parent=5 // pred_check
        %p2372 = pneg %p2371
      $region58: #{tpu_custom_call.1} parent=5 // pred_check_branch
        %2374 = sbr.rel (%p2372) target = $region60
      $region59: #{tpu_custom_call.1} parent=5 // pred_region
        %s2375 = ssub.s32 %s17, 2
        // Predicated region
        $region61: #{tpu_custom_call.1} parent=59 // pred_check
          %p2376 = pneg %p224
        $region62: #{tpu_custom_call.1} parent=59 // pred_check_branch
          %2378 = sbr.rel (%p2376) target = $region64
        $region63: #{tpu_custom_call.1} parent=59 // pred_region
          %s2379 = sand.u32 %s209, 1
          %s2380 = scalar_lea.sflag [#allocation5], %s2379
          %s2381 = sand.u32 %s209, 1
          %s2382 = smul.addr %s2381, 64
          %s2383 = scalar_lea.vmem [#allocation4], %s2382
          %2385 = dma.done %s2380, 1024
        $region64: #{tpu_custom_call.1} parent=59 // pred_fallthru
          _
      $region60: #{tpu_custom_call.1} parent=5 // pred_fallthru
        _
    $region6: #{tpu_custom_call.1} parent=1 // loop_footer
      %s21 = sadd.s32 1, %s17
    $region7: #{tpu_custom_call.1} parent=1 // loop_footer_branch
      %16 = sbr.rel target = $region3
    $region8: #{tpu_custom_call.1} parent=1 // loop_exit
      _
    %2386 = vsyncpa [#allocation5], 1
    %s2387 = scalar_lea.sflag [#allocation5], 1
    %2388 = vsyncpa %s2387, 1

</llo_original>
